<compile_context>
chip_gen: v7x
topology: tpu7x:2x2x1
jax: 0.10.0
libtpu: 0.0.40
codegen_flags: <defaults>
</compile_context>

<pallas_src>
import functools
import math

import jax
import jax.numpy as jnp
import numpy as np
from jax import lax
from jax.experimental import pallas as pl
from jax.experimental.pallas import tpu as pltpu


def _round_up(x, m):
    return ((x + m - 1) // m) * m


# ----------------------------------------------------------------------------
# Weight prep: PyTorch (4H, D) -> (D, G) packed-gate layout
#   gate k (i, f, g, o order) lives at columns [k*H, (k+1)*H); zero pad to G.
# ----------------------------------------------------------------------------
def _prep_gate_matrix(w, G):
    w_t = jnp.transpose(w)                                    # (D, 4H)
    return jnp.pad(w_t, ((0, 0), (0, G - w_t.shape[1])))      # (D, G)


def _prep_gate_bias(b, G):
    b = b.reshape(1, -1)                                      # (1, 4H)
    return jnp.pad(b, ((0, 0), (0, G - b.shape[1])))          # (1, G)


# ----------------------------------------------------------------------------
# Fused per-layer LSTM kernel:
#   per grid step (one time chunk):
#     1. whole-chunk input projection -> gx scratch (off the serial path)
#     2. serial recurrence over the chunk (partially unrolled fori_loop)
# ----------------------------------------------------------------------------
def _lstm_layer_kernel(x_ref, wih_ref, whh_ref, b_ref,          # inputs
                       hseq_ref, hfin_ref, cfin_ref,            # outputs
                       h_sc, c_sc, gx_sc,                       # scratch
                       *, H, seq_len, chunk, mask_tail, unroll):
    c_idx = pl.program_id(0)
    last = pl.num_programs(0) - 1
    Bp = h_sc.shape[0]                       # padded batch rows (multiple of 8)
    w_dtype = wih_ref.dtype                  # f32 or bf16 weights

    @pl.when(c_idx == 0)
    def _():
        h_sc[...] = jnp.zeros_like(h_sc)
        c_sc[...] = jnp.zeros_like(c_sc)
        # Cheap insurance: resident final-state blocks are never flushed
        # uninitialized even if the grid order / out_specs ever change.
        hfin_ref[...] = jnp.zeros_like(hfin_ref)
        cfin_ref[...] = jnp.zeros_like(cfin_ref)

    # ---- Fused whole-chunk input projection (single MXU matmul), staged in
    # VMEM scratch so the per-step loop only does the recurrent matmul. ----
    gx_sc[...] = (jnp.dot(x_ref[...].astype(w_dtype), wih_ref[...],
                          preferred_element_type=jnp.float32)
                  + b_ref[...])

    def step(i, masked):
        row = pl.multiple_of(i * Bp, Bp)            # sublane-aligned (Bp == 8)
        # Only the recurrent matmul sits on the serial per-step path.
        gates = gx_sc[pl.ds(row, Bp), :] + jnp.dot(
            h_sc[...].astype(w_dtype), whh_ref[...],
            preferred_element_type=jnp.float32)
        # Packed-gate static lane sub-slices (i, f, g, o -- PyTorch order).
        i_g = jax.nn.sigmoid(gates[:, 0 * H:1 * H])
        f_g = jax.nn.sigmoid(gates[:, 1 * H:2 * H])
        g_g = jnp.tanh(gates[:, 2 * H:3 * H])
        o_g = jax.nn.sigmoid(gates[:, 3 * H:4 * H])
        c_new = f_g * c_sc[...] + i_g * g_g
        h_new = o_g * jnp.tanh(c_new)
        if masked:
            # Only traced for the tail chunk: arithmetic blend with a scalar
            # 0/1 keep-flag (safe, cheap broadcast; freezes h/c past seq_len).
            keep = ((c_idx * chunk + i) < seq_len).astype(jnp.float32)
            c_new = keep * c_new + (1.0 - keep) * c_sc[...]
            h_new = keep * h_new + (1.0 - keep) * h_sc[...]
        c_sc[...] = c_new
        h_sc[...] = h_new
        hseq_ref[pl.ds(row, Bp), :] = h_new

    def run_chunk(masked):
        def body(i, carry):
            step(i, masked)
            return carry
        lax.fori_loop(0, chunk, body, 0, unroll=unroll)

    if mask_tail:
        # Tail-masking cost only in the final chunk; earlier chunks select-free.
        @pl.when(c_idx != last)
        def _():
            run_chunk(False)

        @pl.when(c_idx == last)
        def _():
            run_chunk(True)
    else:
        run_chunk(False)

    # Final states written once, at the end of the serial grid.
    @pl.when(c_idx == last)
    def _():
        hfin_ref[...] = h_sc[...]
        cfin_ref[...] = c_sc[...]


def lstm_layer(x2d, w_ih_t, w_hh_t, bias, *, B_pad, H, seq_len, chunk,
               inner_unroll):
    """One fused LSTM layer.

    x2d:    (T_pad*B_pad, D) time-major-flattened activations, f32.
    w_ih_t: (D, G) packed-gate input weights (f32 or bf16).
    w_hh_t: (H, G) packed-gate recurrent weights (same dtype).
    bias:   (1, G) f32 (b_ih + b_hh).
    Returns hseq (T_pad*B_pad, H) f32, h_T (B_pad, H) f32, c_T (B_pad, H) f32.
    """
    M, D = x2d.shape
    G = w_ih_t.shape[1]
    rows_per_chunk = chunk * B_pad
    assert M % rows_per_chunk == 0
    n_chunks = M // rows_per_chunk
    T_pad = M // B_pad

    kernel = functools.partial(
        _lstm_layer_kernel, H=H, seq_len=seq_len, chunk=chunk,
        mask_tail=(T_pad != seq_len), unroll=min(inner_unroll, chunk))

    # VMEM working set (double-buffered x / hseq blocks + gx scratch + weights)
    # is far below the 32 MiB scoped default at these shapes; re-derive and set
    # vmem_limit_bytes when enlarging chunk/d_model, especially on v7x (64 MiB).
    return pl.pallas_call(
        kernel,
        out_shape=(jax.ShapeDtypeStruct((M, H), jnp.float32),
                   jax.ShapeDtypeStruct((B_pad, H), jnp.float32),
                   jax.ShapeDtypeStruct((B_pad, H), jnp.float32)),
        grid_spec=pltpu.PrefetchScalarGridSpec(
            num_scalar_prefetch=0,
            grid=(n_chunks,),
            in_specs=[
                pl.BlockSpec((rows_per_chunk, D), lambda c: (c, 0)),  # x chunk
                pl.BlockSpec((D, G), lambda c: (0, 0)),               # W_ih^T
                pl.BlockSpec((H, G), lambda c: (0, 0)),               # W_hh^T
                pl.BlockSpec((1, G), lambda c: (0, 0)),               # bias
            ],
            out_specs=[
                pl.BlockSpec((rows_per_chunk, H), lambda c: (c, 0)),  # hseq
                pl.BlockSpec((B_pad, H), lambda c: (0, 0)),           # h_T
                pl.BlockSpec((B_pad, H), lambda c: (0, 0)),           # c_T
            ],
            scratch_shapes=[
                pltpu.VMEM((B_pad, H), jnp.float32),                  # h state
                pltpu.VMEM((B_pad, H), jnp.float32),                  # c state
                pltpu.VMEM((rows_per_chunk, G), jnp.float32),         # gx chunk
            ]),
        compiler_params=pltpu.CompilerParams(
            dimension_semantics=("arbitrary",)),      # true time recurrence
    )(x2d, w_ih_t, w_hh_t, bias)


# ----------------------------------------------------------------------------
# Encoder forward
# ----------------------------------------------------------------------------
def encoder_forward(params, conti, cate, *, time_chunk=64, inner_unroll=8,
                    param_dtype=jnp.float32):
    """conti: (B, T, d_input) f32; cate: (B, T, n_cate) int32.
    Returns (hidden, cell), each (n_layers, B, d_model).
    param_dtype=jnp.bfloat16 feeds the MXU at native bf16 rate on v6e/v7x;
    state and all elementwise gate math stay f32 (v5e-safe)."""
    B, T, _ = conti.shape
    H = params["lstm"][0][1].shape[1]                # w_hh: (4H, H)
    G = _round_up(4 * H, 128)                        # packed gate width
    B_pad = _round_up(B, 8)                          # f32 sublane tile

    inner_unroll = max(1, int(inner_unroll))
    chunk = min(int(time_chunk), _round_up(T, inner_unroll))
    chunk = _round_up(max(chunk, inner_unroll), inner_unroll)
    T_pad = pl.cdiv(T, chunk) * chunk

    # TODO(synk): the embedding gather is a data-dependent lookup; it stays as
    # plain-JAX jnp.take (XLA gather) rather than being faked inside the kernel.
    emb = [jnp.take(tbl, cate[:, :, i], axis=0)
           for i, tbl in enumerate(params["embeddings"])]       # (B, T, d_emb)
    x = jnp.concatenate([conti] + emb, axis=-1)                 # (B, T, D0)

    # Time-major, padded, flattened to a 2-D slab (tiny D0 transpose, not gates).
    x = jnp.transpose(x, (1, 0, 2))                             # (T, B, D0)
    x = jnp.pad(x, ((0, T_pad - T), (0, B_pad - B), (0, 0)))
    cur = x.reshape(T_pad * B_pad, x.shape[-1])                 # (T_pad*B_pad, D0)

    hiddens, cells = [], []
    for (w_ih, w_hh, b_ih, b_hh) in params["lstm"]:
        w_ih_t = _prep_gate_matrix(w_ih, G).astype(param_dtype)  # (D, G)
        w_hh_t = _prep_gate_matrix(w_hh, G).astype(param_dtype)  # (H, G)
        bias = _prep_gate_bias(b_ih + b_hh, G)                   # (1, G) f32

        hseq, h_fin, c_fin = lstm_layer(cur, w_ih_t, w_hh_t, bias,
                                        B_pad=B_pad, H=H, seq_len=T,
                                        chunk=chunk, inner_unroll=inner_unroll)
        hiddens.append(h_fin[:B, :])
        cells.append(c_fin[:B, :])
        cur = hseq                                  # (T_pad*B_pad, H), f32
    # nn.LSTM inter-layer dropout is train-only (identity at inference).
    return jnp.stack(hiddens, axis=0), jnp.stack(cells, axis=0)


# ----------------------------------------------------------------------------
# Pure-JAX reference (for correctness checks)
# ----------------------------------------------------------------------------
def encoder_forward_ref(params, conti, cate, *, param_dtype=jnp.float32):
    emb = [jnp.take(tbl, cate[:, :, i], axis=0)
           for i, tbl in enumerate(params["embeddings"])]
    x = jnp.concatenate([conti] + emb, axis=-1)                 # (B, T, D0)
    B, T, _ = x.shape
    hiddens, cells = [], []
    for (w_ih, w_hh, b_ih, b_hh) in params["lstm"]:
        H = w_hh.shape[1]
        w_ih_t = jnp.transpose(w_ih).astype(param_dtype)
        w_hh_t = jnp.transpose(w_hh).astype(param_dtype)
        b = (b_ih + b_hh)[None, :]
        h = jnp.zeros((B, H), jnp.float32)
        c = jnp.zeros((B, H), jnp.float32)
        outs = []
        for t in range(T):
            g = (jnp.dot(x[:, t, :].astype(param_dtype), w_ih_t,
                         preferred_element_type=jnp.float32)
                 + jnp.dot(h.astype(param_dtype), w_hh_t,
                           preferred_element_type=jnp.float32) + b)
            i_ = jax.nn.sigmoid(g[:, 0 * H:1 * H])
            f_ = jax.nn.sigmoid(g[:, 1 * H:2 * H])
            g_ = jnp.tanh(g[:, 2 * H:3 * H])
            o_ = jax.nn.sigmoid(g[:, 3 * H:4 * H])
            c = f_ * c + i_ * g_
            h = o_ * jnp.tanh(c)
            outs.append(h)
        x = jnp.stack(outs, axis=1)
        hiddens.append(h)
        cells.append(c)
    return jnp.stack(hiddens, 0), jnp.stack(cells, 0)


# ----------------------------------------------------------------------------
# Deterministic parameter init (mirrors nn.Embedding / nn.LSTM shapes)
# ----------------------------------------------------------------------------
def init_params(key, d_input, d_embedding, n_embedding, d_model, n_layers):
    keys = jax.random.split(key, 1 + len(n_embedding) + 4 * n_layers)
    kidx = 0
    embeddings = []
    for n in n_embedding:
        embeddings.append(jax.random.normal(keys[kidx], (n, d_embedding),
                                            jnp.float32))
        kidx += 1
    lstm = []
    d_in0 = d_input + len(n_embedding) * d_embedding
    k = 1.0 / math.sqrt(d_model)
    for layer in range(n_layers):
        d_in = d_in0 if layer == 0 else d_model
        w_ih = jax.random.uniform(keys[kidx], (4 * d_model, d_in),
                                  jnp.float32, -k, k); kidx += 1
        w_hh = jax.random.uniform(keys[kidx], (4 * d_model, d_model),
                                  jnp.float32, -k, k); kidx += 1
        b_ih = jax.random.uniform(keys[kidx], (4 * d_model,),
                                  jnp.float32, -k, k); kidx += 1
        b_hh = jax.random.uniform(keys[kidx], (4 * d_model,),
                                  jnp.float32, -k, k); kidx += 1
        lstm.append((w_ih, w_hh, b_ih, b_hh))
    return {"embeddings": embeddings, "lstm": lstm}


if __name__ == "__main__":
    d_input, d_embedding, n_embedding = 4, 2, [5, 7]
    d_model, n_layers = 32, 2

    key = jax.random.PRNGKey(0)
    kp = jax.random.fold_in(key, 0)
    params = init_params(kp, d_input, d_embedding, n_embedding, d_model, n_layers)

    def make_inputs(B, T, seed):
        kc_, kk_ = jax.random.split(jax.random.fold_in(key, seed))
        conti = jax.random.normal(kc_, (B, T, d_input), jnp.float32)
        cate = jnp.stack(
            [jax.random.randint(jax.random.fold_in(kk_, i), (B, T), 0, n)
             for i, n in enumerate(n_embedding)], axis=-1).astype(jnp.int32)
        return conti, cate

    # 1) f32 weights, T an exact multiple of the chunk (no tail) -- tight check.
    conti, cate = make_inputs(B=2, T=8, seed=1)
    hidden, cell = encoder_forward(params, conti, cate)
    hidden = jax.block_until_ready(hidden)
    cell = jax.block_until_ready(cell)
    h_ref, c_ref = encoder_forward_ref(params, conti, cate)
    np.testing.assert_allclose(np.asarray(hidden), np.asarray(h_ref),
                               rtol=1e-3, atol=1e-3)
    np.testing.assert_allclose(np.asarray(cell), np.asarray(c_ref),
                               rtol=1e-3, atol=1e-3)
    assert hidden.shape == (n_layers, 2, d_model)
    assert cell.shape == (n_layers, 2, d_model)

    # 2) f32 weights, ragged T (exercises multi-chunk grid + masked tail chunk).
    conti2, cate2 = make_inputs(B=3, T=11, seed=2)
    hidden2, cell2 = encoder_forward(params, conti2, cate2,
                                     time_chunk=8, inner_unroll=8)
    hidden2 = jax.block_until_ready(hidden2)
    h_ref2, c_ref2 = encoder_forward_ref(params, conti2, cate2)
    np.testing.assert_allclose(np.asarray(hidden2), np.asarray(h_ref2),
                               rtol=1e-3, atol=1e-3)
    np.testing.assert_allclose(np.asarray(cell2), np.asarray(c_ref2),
                               rtol=1e-3, atol=1e-3)

    # 3) bf16 weights (v6e/v7x MXU-rate config); f32 state / elementwise math.
    hidden3, cell3 = encoder_forward(params, conti, cate,
                                     param_dtype=jnp.bfloat16)
    hidden3 = jax.block_until_ready(hidden3)
    h_ref3, c_ref3 = encoder_forward_ref(params, conti, cate,
                                         param_dtype=jnp.bfloat16)
    np.testing.assert_allclose(np.asarray(hidden3), np.asarray(h_ref3),
                               rtol=2e-3, atol=2e-3)
    np.testing.assert_allclose(np.asarray(cell3), np.asarray(c_ref3),
                               rtol=2e-3, atol=2e-3)

    print("KERNEL_OK")
</pallas_src>

<mosaic_0001>
module attributes {stable_mosaic.version = 11 : i64} {
  func.func @_lstm_layer_kernel(%arg0: i32, %arg1: memref<64x8xf32, #tpu.memory_space<vmem>>, %arg2: memref<8x128xf32, #tpu.memory_space<vmem>>, %arg3: memref<32x128xf32, #tpu.memory_space<vmem>>, %arg4: memref<1x128xf32, #tpu.memory_space<vmem>>, %arg5: memref<64x32xf32, #tpu.memory_space<vmem>>, %arg6: memref<8x32xf32, #tpu.memory_space<vmem>>, %arg7: memref<8x32xf32, #tpu.memory_space<vmem>>, %arg8: memref<8x32xf32, #tpu.memory_space<vmem>>, %arg9: memref<8x32xf32, #tpu.memory_space<vmem>>, %arg10: memref<64x128xf32, #tpu.memory_space<vmem>>) attributes {dimension_semantics = [#tpu.dimension_semantics<arbitrary>], iteration_bounds = array<i64: 1>, scalar_prefetch = 0 : i64, scratch_operands = 3 : i64, tpu.core_type = #tpu.core_type<tc>, window_params = [{transform_indices = @transform_0, window_bounds = array<i64: 64, 8>}, {pipeline_mode = #tpu.pipeline_mode<synchronous>, transform_indices = @transform_1, window_bounds = array<i64: 8, 128>}, {pipeline_mode = #tpu.pipeline_mode<synchronous>, transform_indices = @transform_2, window_bounds = array<i64: 32, 128>}, {pipeline_mode = #tpu.pipeline_mode<synchronous>, transform_indices = @transform_3, window_bounds = array<i64: 1, 128>}, {transform_indices = @transform_4, window_bounds = array<i64: 64, 32>}, {pipeline_mode = #tpu.pipeline_mode<synchronous>, transform_indices = @transform_5, window_bounds = array<i64: 8, 32>}, {pipeline_mode = #tpu.pipeline_mode<synchronous>, transform_indices = @transform_6, window_bounds = array<i64: 8, 32>}]} {
    %c0_i32 = arith.constant 0 : i32
    %0 = arith.cmpi eq, %arg0, %c0_i32 : i32
    %1 = arith.extui %0 : i1 to i32
    %c0_i32_0 = arith.constant 0 : i32
    %2 = arith.cmpi ne, %1, %c0_i32_0 : i32
    scf.if %2 {
      %cst_147 = arith.constant 0.000000e+00 : f32
      %317 = vector.broadcast %cst_147 : f32 to vector<8x32xf32>
      %c0_148 = arith.constant 0 : index
      %c0_149 = arith.constant 0 : index
      %318 = vector.load %arg8[%c0_148, %c0_149] : memref<8x32xf32, #tpu.memory_space<vmem>>, vector<8x32xf32>
      tpu.vector_store %arg8[%c0_148, %c0_149], %317 {strides = array<i32>} : memref<8x32xf32, #tpu.memory_space<vmem>>, vector<8x32xf32>,
      %cst_150 = arith.constant 0.000000e+00 : f32
      %319 = vector.broadcast %cst_150 : f32 to vector<8x32xf32>
      %c0_151 = arith.constant 0 : index
      %c0_152 = arith.constant 0 : index
      %320 = vector.load %arg9[%c0_151, %c0_152] : memref<8x32xf32, #tpu.memory_space<vmem>>, vector<8x32xf32>
      tpu.vector_store %arg9[%c0_151, %c0_152], %319 {strides = array<i32>} : memref<8x32xf32, #tpu.memory_space<vmem>>, vector<8x32xf32>,
      %cst_153 = arith.constant 0.000000e+00 : f32
      %321 = vector.broadcast %cst_153 : f32 to vector<8x32xf32>
      %c0_154 = arith.constant 0 : index
      %c0_155 = arith.constant 0 : index
      %322 = vector.load %arg6[%c0_154, %c0_155] : memref<8x32xf32, #tpu.memory_space<vmem>>, vector<8x32xf32>
      tpu.vector_store %arg6[%c0_154, %c0_155], %321 {strides = array<i32>} : memref<8x32xf32, #tpu.memory_space<vmem>>, vector<8x32xf32>,
      %cst_156 = arith.constant 0.000000e+00 : f32
      %323 = vector.broadcast %cst_156 : f32 to vector<8x32xf32>
      %c0_157 = arith.constant 0 : index
      %c0_158 = arith.constant 0 : index
      %324 = vector.load %arg7[%c0_157, %c0_158] : memref<8x32xf32, #tpu.memory_space<vmem>>, vector<8x32xf32>
      tpu.vector_store %arg7[%c0_157, %c0_158], %323 {strides = array<i32>} : memref<8x32xf32, #tpu.memory_space<vmem>>, vector<8x32xf32>,
    } else {
    }
    %c0 = arith.constant 0 : index
    %c0_1 = arith.constant 0 : index
    %3 = vector.load %arg1[%c0, %c0_1] : memref<64x8xf32, #tpu.memory_space<vmem>>, vector<64x8xf32>
    %c0_2 = arith.constant 0 : index
    %c0_3 = arith.constant 0 : index
    %4 = vector.load %arg2[%c0_2, %c0_3] : memref<8x128xf32, #tpu.memory_space<vmem>>, vector<8x128xf32>
    %cst = arith.constant dense<0.000000e+00> : vector<64x128xf32>
    %5 = tpu.matmul %3, %4, %cst {dimension_numbers = #tpu.dot_dimension_numbers<[1], [0], [0], [1], [0, 0, 1, 1], [], []>} : vector<64x8xf32>, vector<8x128xf32>, vector<64x128xf32> -> vector<64x128xf32>
    %c0_4 = arith.constant 0 : index
    %c0_5 = arith.constant 0 : index
    %6 = vector.load %arg4[%c0_4, %c0_5] : memref<1x128xf32, #tpu.memory_space<vmem>>, vector<1x128xf32>
    %7 = vector.broadcast %6 : vector<1x128xf32> to vector<64x128xf32>
    %8 = arith.addf %5, %7 : vector<64x128xf32>
    %c0_6 = arith.constant 0 : index
    %c0_7 = arith.constant 0 : index
    %9 = vector.load %arg10[%c0_6, %c0_7] : memref<64x128xf32, #tpu.memory_space<vmem>>, vector<64x128xf32>
    tpu.vector_store %arg10[%c0_6, %c0_7], %8 {strides = array<i32>} : memref<64x128xf32, #tpu.memory_space<vmem>>, vector<64x128xf32>,
    %c0_i32_8 = arith.constant 0 : i32
    %c8_i32 = arith.constant 8 : i32
    %10 = arith.muli %c0_i32_8, %c8_i32 : i32
    %11 = tpu.assume_multiple %10, 8 : i32
    %12 = arith.index_cast %11 : i32 to index
    %c0_9 = arith.constant 0 : index
    %13 = vector.load %arg10[%12, %c0_9] : memref<64x128xf32, #tpu.memory_space<vmem>>, vector<8x128xf32>
    %c0_10 = arith.constant 0 : index
    %c0_11 = arith.constant 0 : index
    %14 = vector.load %arg8[%c0_10, %c0_11] : memref<8x32xf32, #tpu.memory_space<vmem>>, vector<8x32xf32>
    %c0_12 = arith.constant 0 : index
    %c0_13 = arith.constant 0 : index
    %15 = vector.load %arg3[%c0_12, %c0_13] : memref<32x128xf32, #tpu.memory_space<vmem>>, vector<32x128xf32>
    %cst_14 = arith.constant dense<0.000000e+00> : vector<8x128xf32>
    %16 = tpu.matmul %14, %15, %cst_14 {dimension_numbers = #tpu.dot_dimension_numbers<[1], [0], [0], [1], [0, 0, 1, 1], [], []>} : vector<8x32xf32>, vector<32x128xf32>, vector<8x128xf32> -> vector<8x128xf32>
    %17 = arith.addf %13, %16 : vector<8x128xf32>
    %18 = vector.extract_strided_slice %17 {offsets = [0, 0], sizes = [8, 32], strides = [1, 1]} : vector<8x128xf32> to vector<8x32xf32>
    %19 = arith.negf %18 : vector<8x32xf32>
    %20 = math.exp %19 : vector<8x32xf32>
    %cst_15 = arith.constant 1.000000e+00 : f32
    %21 = vector.broadcast %cst_15 : f32 to vector<8x32xf32>
    %22 = arith.addf %21, %20 : vector<8x32xf32>
    %23 = arith.divf %21, %22 : vector<8x32xf32>
    %24 = vector.extract_strided_slice %17 {offsets = [0, 32], sizes = [8, 32], strides = [1, 1]} : vector<8x128xf32> to vector<8x32xf32>
    %25 = arith.negf %24 : vector<8x32xf32>
    %26 = math.exp %25 : vector<8x32xf32>
    %cst_16 = arith.constant 1.000000e+00 : f32
    %27 = vector.broadcast %cst_16 : f32 to vector<8x32xf32>
    %28 = arith.addf %27, %26 : vector<8x32xf32>
    %29 = arith.divf %27, %28 : vector<8x32xf32>
    %30 = vector.extract_strided_slice %17 {offsets = [0, 64], sizes = [8, 32], strides = [1, 1]} : vector<8x128xf32> to vector<8x32xf32>
    %31 = math.tanh %30 : vector<8x32xf32>
    %32 = vector.extract_strided_slice %17 {offsets = [0, 96], sizes = [8, 32], strides = [1, 1]} : vector<8x128xf32> to vector<8x32xf32>
    %33 = arith.negf %32 : vector<8x32xf32>
    %34 = math.exp %33 : vector<8x32xf32>
    %cst_17 = arith.constant 1.000000e+00 : f32
    %35 = vector.broadcast %cst_17 : f32 to vector<8x32xf32>
    %36 = arith.addf %35, %34 : vector<8x32xf32>
    %37 = arith.divf %35, %36 : vector<8x32xf32>
    %c0_18 = arith.constant 0 : index
    %c0_19 = arith.constant 0 : index
    %38 = vector.load %arg9[%c0_18, %c0_19] : memref<8x32xf32, #tpu.memory_space<vmem>>, vector<8x32xf32>
    %39 = arith.mulf %29, %38 : vector<8x32xf32>
    %40 = arith.mulf %23, %31 : vector<8x32xf32>
    %41 = arith.addf %39, %40 : vector<8x32xf32>
    %42 = math.tanh %41 : vector<8x32xf32>
    %43 = arith.mulf %37, %42 : vector<8x32xf32>
    %c0_20 = arith.constant 0 : index
    %c0_21 = arith.constant 0 : index
    %44 = vector.load %arg9[%c0_20, %c0_21] : memref<8x32xf32, #tpu.memory_space<vmem>>, vector<8x32xf32>
    tpu.vector_store %arg9[%c0_20, %c0_21], %41 {strides = array<i32>} : memref<8x32xf32, #tpu.memory_space<vmem>>, vector<8x32xf32>,
    %c0_22 = arith.constant 0 : index
    %c0_23 = arith.constant 0 : index
    %45 = vector.load %arg8[%c0_22, %c0_23] : memref<8x32xf32, #tpu.memory_space<vmem>>, vector<8x32xf32>
    tpu.vector_store %arg8[%c0_22, %c0_23], %43 {strides = array<i32>} : memref<8x32xf32, #tpu.memory_space<vmem>>, vector<8x32xf32>,
    %46 = arith.index_cast %11 : i32 to index
    %c0_24 = arith.constant 0 : index
    %47 = vector.load %arg5[%46, %c0_24] : memref<64x32xf32, #tpu.memory_space<vmem>>, vector<8x32xf32>
    tpu.vector_store %arg5[%46, %c0_24], %43 {strides = array<i32>} : memref<64x32xf32, #tpu.memory_space<vmem>>, vector<8x32xf32>,
    %c1_i32 = arith.constant 1 : i32
    %c8_i32_25 = arith.constant 8 : i32
    %48 = arith.muli %c1_i32, %c8_i32_25 : i32
    %49 = tpu.assume_multiple %48, 8 : i32
    %50 = arith.index_cast %49 : i32 to index
    %c0_26 = arith.constant 0 : index
    %51 = vector.load %arg10[%50, %c0_26] : memref<64x128xf32, #tpu.memory_space<vmem>>, vector<8x128xf32>
    %c0_27 = arith.constant 0 : index
    %c0_28 = arith.constant 0 : index
    %52 = vector.load %arg8[%c0_27, %c0_28] : memref<8x32xf32, #tpu.memory_space<vmem>>, vector<8x32xf32>
    %c0_29 = arith.constant 0 : index
    %c0_30 = arith.constant 0 : index
    %53 = vector.load %arg3[%c0_29, %c0_30] : memref<32x128xf32, #tpu.memory_space<vmem>>, vector<32x128xf32>
    %cst_31 = arith.constant dense<0.000000e+00> : vector<8x128xf32>
    %54 = tpu.matmul %52, %53, %cst_31 {dimension_numbers = #tpu.dot_dimension_numbers<[1], [0], [0], [1], [0, 0, 1, 1], [], []>} : vector<8x32xf32>, vector<32x128xf32>, vector<8x128xf32> -> vector<8x128xf32>
    %55 = arith.addf %51, %54 : vector<8x128xf32>
    %56 = vector.extract_strided_slice %55 {offsets = [0, 0], sizes = [8, 32], strides = [1, 1]} : vector<8x128xf32> to vector<8x32xf32>
    %57 = arith.negf %56 : vector<8x32xf32>
    %58 = math.exp %57 : vector<8x32xf32>
    %cst_32 = arith.constant 1.000000e+00 : f32
    %59 = vector.broadcast %cst_32 : f32 to vector<8x32xf32>
    %60 = arith.addf %59, %58 : vector<8x32xf32>
    %61 = arith.divf %59, %60 : vector<8x32xf32>
    %62 = vector.extract_strided_slice %55 {offsets = [0, 32], sizes = [8, 32], strides = [1, 1]} : vector<8x128xf32> to vector<8x32xf32>
    %63 = arith.negf %62 : vector<8x32xf32>
    %64 = math.exp %63 : vector<8x32xf32>
    %cst_33 = arith.constant 1.000000e+00 : f32
    %65 = vector.broadcast %cst_33 : f32 to vector<8x32xf32>
    %66 = arith.addf %65, %64 : vector<8x32xf32>
    %67 = arith.divf %65, %66 : vector<8x32xf32>
    %68 = vector.extract_strided_slice %55 {offsets = [0, 64], sizes = [8, 32], strides = [1, 1]} : vector<8x128xf32> to vector<8x32xf32>
    %69 = math.tanh %68 : vector<8x32xf32>
    %70 = vector.extract_strided_slice %55 {offsets = [0, 96], sizes = [8, 32], strides = [1, 1]} : vector<8x128xf32> to vector<8x32xf32>
    %71 = arith.negf %70 : vector<8x32xf32>
    %72 = math.exp %71 : vector<8x32xf32>
    %cst_34 = arith.constant 1.000000e+00 : f32
    %73 = vector.broadcast %cst_34 : f32 to vector<8x32xf32>
    %74 = arith.addf %73, %72 : vector<8x32xf32>
    %75 = arith.divf %73, %74 : vector<8x32xf32>
    %c0_35 = arith.constant 0 : index
    %c0_36 = arith.constant 0 : index
    %76 = vector.load %arg9[%c0_35, %c0_36] : memref<8x32xf32, #tpu.memory_space<vmem>>, vector<8x32xf32>
    %77 = arith.mulf %67, %76 : vector<8x32xf32>
    %78 = arith.mulf %61, %69 : vector<8x32xf32>
    %79 = arith.addf %77, %78 : vector<8x32xf32>
    %80 = math.tanh %79 : vector<8x32xf32>
    %81 = arith.mulf %75, %80 : vector<8x32xf32>
    %c0_37 = arith.constant 0 : index
    %c0_38 = arith.constant 0 : index
    %82 = vector.load %arg9[%c0_37, %c0_38] : memref<8x32xf32, #tpu.memory_space<vmem>>, vector<8x32xf32>
    tpu.vector_store %arg9[%c0_37, %c0_38], %79 {strides = array<i32>} : memref<8x32xf32, #tpu.memory_space<vmem>>, vector<8x32xf32>,
    %c0_39 = arith.constant 0 : index
    %c0_40 = arith.constant 0 : index
    %83 = vector.load %arg8[%c0_39, %c0_40] : memref<8x32xf32, #tpu.memory_space<vmem>>, vector<8x32xf32>
    tpu.vector_store %arg8[%c0_39, %c0_40], %81 {strides = array<i32>} : memref<8x32xf32, #tpu.memory_space<vmem>>, vector<8x32xf32>,
    %84 = arith.index_cast %49 : i32 to index
    %c0_41 = arith.constant 0 : index
    %85 = vector.load %arg5[%84, %c0_41] : memref<64x32xf32, #tpu.memory_space<vmem>>, vector<8x32xf32>
    tpu.vector_store %arg5[%84, %c0_41], %81 {strides = array<i32>} : memref<64x32xf32, #tpu.memory_space<vmem>>, vector<8x32xf32>,
    %c2_i32 = arith.constant 2 : i32
    %c8_i32_42 = arith.constant 8 : i32
    %86 = arith.muli %c2_i32, %c8_i32_42 : i32
    %87 = tpu.assume_multiple %86, 8 : i32
    %88 = arith.index_cast %87 : i32 to index
    %c0_43 = arith.constant 0 : index
    %89 = vector.load %arg10[%88, %c0_43] : memref<64x128xf32, #tpu.memory_space<vmem>>, vector<8x128xf32>
    %c0_44 = arith.constant 0 : index
    %c0_45 = arith.constant 0 : index
    %90 = vector.load %arg8[%c0_44, %c0_45] : memref<8x32xf32, #tpu.memory_space<vmem>>, vector<8x32xf32>
    %c0_46 = arith.constant 0 : index
    %c0_47 = arith.constant 0 : index
    %91 = vector.load %arg3[%c0_46, %c0_47] : memref<32x128xf32, #tpu.memory_space<vmem>>, vector<32x128xf32>
    %cst_48 = arith.constant dense<0.000000e+00> : vector<8x128xf32>
    %92 = tpu.matmul %90, %91, %cst_48 {dimension_numbers = #tpu.dot_dimension_numbers<[1], [0], [0], [1], [0, 0, 1, 1], [], []>} : vector<8x32xf32>, vector<32x128xf32>, vector<8x128xf32> -> vector<8x128xf32>
    %93 = arith.addf %89, %92 : vector<8x128xf32>
    %94 = vector.extract_strided_slice %93 {offsets = [0, 0], sizes = [8, 32], strides = [1, 1]} : vector<8x128xf32> to vector<8x32xf32>
    %95 = arith.negf %94 : vector<8x32xf32>
    %96 = math.exp %95 : vector<8x32xf32>
    %cst_49 = arith.constant 1.000000e+00 : f32
    %97 = vector.broadcast %cst_49 : f32 to vector<8x32xf32>
    %98 = arith.addf %97, %96 : vector<8x32xf32>
    %99 = arith.divf %97, %98 : vector<8x32xf32>
    %100 = vector.extract_strided_slice %93 {offsets = [0, 32], sizes = [8, 32], strides = [1, 1]} : vector<8x128xf32> to vector<8x32xf32>
    %101 = arith.negf %100 : vector<8x32xf32>
    %102 = math.exp %101 : vector<8x32xf32>
    %cst_50 = arith.constant 1.000000e+00 : f32
    %103 = vector.broadcast %cst_50 : f32 to vector<8x32xf32>
    %104 = arith.addf %103, %102 : vector<8x32xf32>
    %105 = arith.divf %103, %104 : vector<8x32xf32>
    %106 = vector.extract_strided_slice %93 {offsets = [0, 64], sizes = [8, 32], strides = [1, 1]} : vector<8x128xf32> to vector<8x32xf32>
    %107 = math.tanh %106 : vector<8x32xf32>
    %108 = vector.extract_strided_slice %93 {offsets = [0, 96], sizes = [8, 32], strides = [1, 1]} : vector<8x128xf32> to vector<8x32xf32>
    %109 = arith.negf %108 : vector<8x32xf32>
    %110 = math.exp %109 : vector<8x32xf32>
    %cst_51 = arith.constant 1.000000e+00 : f32
    %111 = vector.broadcast %cst_51 : f32 to vector<8x32xf32>
    %112 = arith.addf %111, %110 : vector<8x32xf32>
    %113 = arith.divf %111, %112 : vector<8x32xf32>
    %c0_52 = arith.constant 0 : index
    %c0_53 = arith.constant 0 : index
    %114 = vector.load %arg9[%c0_52, %c0_53] : memref<8x32xf32, #tpu.memory_space<vmem>>, vector<8x32xf32>
    %115 = arith.mulf %105, %114 : vector<8x32xf32>
    %116 = arith.mulf %99, %107 : vector<8x32xf32>
    %117 = arith.addf %115, %116 : vector<8x32xf32>
    %118 = math.tanh %117 : vector<8x32xf32>
    %119 = arith.mulf %113, %118 : vector<8x32xf32>
    %c0_54 = arith.constant 0 : index
    %c0_55 = arith.constant 0 : index
    %120 = vector.load %arg9[%c0_54, %c0_55] : memref<8x32xf32, #tpu.memory_space<vmem>>, vector<8x32xf32>
    tpu.vector_store %arg9[%c0_54, %c0_55], %117 {strides = array<i32>} : memref<8x32xf32, #tpu.memory_space<vmem>>, vector<8x32xf32>,
    %c0_56 = arith.constant 0 : index
    %c0_57 = arith.constant 0 : index
    %121 = vector.load %arg8[%c0_56, %c0_57] : memref<8x32xf32, #tpu.memory_space<vmem>>, vector<8x32xf32>
    tpu.vector_store %arg8[%c0_56, %c0_57], %119 {strides = array<i32>} : memref<8x32xf32, #tpu.memory_space<vmem>>, vector<8x32xf32>,
    %122 = arith.index_cast %87 : i32 to index
    %c0_58 = arith.constant 0 : index
    %123 = vector.load %arg5[%122, %c0_58] : memref<64x32xf32, #tpu.memory_space<vmem>>, vector<8x32xf32>
    tpu.vector_store %arg5[%122, %c0_58], %119 {strides = array<i32>} : memref<64x32xf32, #tpu.memory_space<vmem>>, vector<8x32xf32>,
    %c3_i32 = arith.constant 3 : i32
    %c8_i32_59 = arith.constant 8 : i32
    %124 = arith.muli %c3_i32, %c8_i32_59 : i32
    %125 = tpu.assume_multiple %124, 8 : i32
    %126 = arith.index_cast %125 : i32 to index
    %c0_60 = arith.constant 0 : index
    %127 = vector.load %arg10[%126, %c0_60] : memref<64x128xf32, #tpu.memory_space<vmem>>, vector<8x128xf32>
    %c0_61 = arith.constant 0 : index
    %c0_62 = arith.constant 0 : index
    %128 = vector.load %arg8[%c0_61, %c0_62] : memref<8x32xf32, #tpu.memory_space<vmem>>, vector<8x32xf32>
    %c0_63 = arith.constant 0 : index
    %c0_64 = arith.constant 0 : index
    %129 = vector.load %arg3[%c0_63, %c0_64] : memref<32x128xf32, #tpu.memory_space<vmem>>, vector<32x128xf32>
    %cst_65 = arith.constant dense<0.000000e+00> : vector<8x128xf32>
    %130 = tpu.matmul %128, %129, %cst_65 {dimension_numbers = #tpu.dot_dimension_numbers<[1], [0], [0], [1], [0, 0, 1, 1], [], []>} : vector<8x32xf32>, vector<32x128xf32>, vector<8x128xf32> -> vector<8x128xf32>
    %131 = arith.addf %127, %130 : vector<8x128xf32>
    %132 = vector.extract_strided_slice %131 {offsets = [0, 0], sizes = [8, 32], strides = [1, 1]} : vector<8x128xf32> to vector<8x32xf32>
    %133 = arith.negf %132 : vector<8x32xf32>
    %134 = math.exp %133 : vector<8x32xf32>
    %cst_66 = arith.constant 1.000000e+00 : f32
    %135 = vector.broadcast %cst_66 : f32 to vector<8x32xf32>
    %136 = arith.addf %135, %134 : vector<8x32xf32>
    %137 = arith.divf %135, %136 : vector<8x32xf32>
    %138 = vector.extract_strided_slice %131 {offsets = [0, 32], sizes = [8, 32], strides = [1, 1]} : vector<8x128xf32> to vector<8x32xf32>
    %139 = arith.negf %138 : vector<8x32xf32>
    %140 = math.exp %139 : vector<8x32xf32>
    %cst_67 = arith.constant 1.000000e+00 : f32
    %141 = vector.broadcast %cst_67 : f32 to vector<8x32xf32>
    %142 = arith.addf %141, %140 : vector<8x32xf32>
    %143 = arith.divf %141, %142 : vector<8x32xf32>
    %144 = vector.extract_strided_slice %131 {offsets = [0, 64], sizes = [8, 32], strides = [1, 1]} : vector<8x128xf32> to vector<8x32xf32>
    %145 = math.tanh %144 : vector<8x32xf32>
    %146 = vector.extract_strided_slice %131 {offsets = [0, 96], sizes = [8, 32], strides = [1, 1]} : vector<8x128xf32> to vector<8x32xf32>
    %147 = arith.negf %146 : vector<8x32xf32>
    %148 = math.exp %147 : vector<8x32xf32>
    %cst_68 = arith.constant 1.000000e+00 : f32
    %149 = vector.broadcast %cst_68 : f32 to vector<8x32xf32>
    %150 = arith.addf %149, %148 : vector<8x32xf32>
    %151 = arith.divf %149, %150 : vector<8x32xf32>
    %c0_69 = arith.constant 0 : index
    %c0_70 = arith.constant 0 : index
    %152 = vector.load %arg9[%c0_69, %c0_70] : memref<8x32xf32, #tpu.memory_space<vmem>>, vector<8x32xf32>
    %153 = arith.mulf %143, %152 : vector<8x32xf32>
    %154 = arith.mulf %137, %145 : vector<8x32xf32>
    %155 = arith.addf %153, %154 : vector<8x32xf32>
    %156 = math.tanh %155 : vector<8x32xf32>
    %157 = arith.mulf %151, %156 : vector<8x32xf32>
    %c0_71 = arith.constant 0 : index
    %c0_72 = arith.constant 0 : index
    %158 = vector.load %arg9[%c0_71, %c0_72] : memref<8x32xf32, #tpu.memory_space<vmem>>, vector<8x32xf32>
    tpu.vector_store %arg9[%c0_71, %c0_72], %155 {strides = array<i32>} : memref<8x32xf32, #tpu.memory_space<vmem>>, vector<8x32xf32>,
    %c0_73 = arith.constant 0 : index
    %c0_74 = arith.constant 0 : index
    %159 = vector.load %arg8[%c0_73, %c0_74] : memref<8x32xf32, #tpu.memory_space<vmem>>, vector<8x32xf32>
    tpu.vector_store %arg8[%c0_73, %c0_74], %157 {strides = array<i32>} : memref<8x32xf32, #tpu.memory_space<vmem>>, vector<8x32xf32>,
    %160 = arith.index_cast %125 : i32 to index
    %c0_75 = arith.constant 0 : index
    %161 = vector.load %arg5[%160, %c0_75] : memref<64x32xf32, #tpu.memory_space<vmem>>, vector<8x32xf32>
    tpu.vector_store %arg5[%160, %c0_75], %157 {strides = array<i32>} : memref<64x32xf32, #tpu.memory_space<vmem>>, vector<8x32xf32>,
    %c4_i32 = arith.constant 4 : i32
    %c8_i32_76 = arith.constant 8 : i32
    %162 = arith.muli %c4_i32, %c8_i32_76 : i32
    %163 = tpu.assume_multiple %162, 8 : i32
    %164 = arith.index_cast %163 : i32 to index
    %c0_77 = arith.constant 0 : index
    %165 = vector.load %arg10[%164, %c0_77] : memref<64x128xf32, #tpu.memory_space<vmem>>, vector<8x128xf32>
    %c0_78 = arith.constant 0 : index
    %c0_79 = arith.constant 0 : index
    %166 = vector.load %arg8[%c0_78, %c0_79] : memref<8x32xf32, #tpu.memory_space<vmem>>, vector<8x32xf32>
    %c0_80 = arith.constant 0 : index
    %c0_81 = arith.constant 0 : index
    %167 = vector.load %arg3[%c0_80, %c0_81] : memref<32x128xf32, #tpu.memory_space<vmem>>, vector<32x128xf32>
    %cst_82 = arith.constant dense<0.000000e+00> : vector<8x128xf32>
    %168 = tpu.matmul %166, %167, %cst_82 {dimension_numbers = #tpu.dot_dimension_numbers<[1], [0], [0], [1], [0, 0, 1, 1], [], []>} : vector<8x32xf32>, vector<32x128xf32>, vector<8x128xf32> -> vector<8x128xf32>
    %169 = arith.addf %165, %168 : vector<8x128xf32>
    %170 = vector.extract_strided_slice %169 {offsets = [0, 0], sizes = [8, 32], strides = [1, 1]} : vector<8x128xf32> to vector<8x32xf32>
    %171 = arith.negf %170 : vector<8x32xf32>
    %172 = math.exp %171 : vector<8x32xf32>
    %cst_83 = arith.constant 1.000000e+00 : f32
    %173 = vector.broadcast %cst_83 : f32 to vector<8x32xf32>
    %174 = arith.addf %173, %172 : vector<8x32xf32>
    %175 = arith.divf %173, %174 : vector<8x32xf32>
    %176 = vector.extract_strided_slice %169 {offsets = [0, 32], sizes = [8, 32], strides = [1, 1]} : vector<8x128xf32> to vector<8x32xf32>
    %177 = arith.negf %176 : vector<8x32xf32>
    %178 = math.exp %177 : vector<8x32xf32>
    %cst_84 = arith.constant 1.000000e+00 : f32
    %179 = vector.broadcast %cst_84 : f32 to vector<8x32xf32>
    %180 = arith.addf %179, %178 : vector<8x32xf32>
    %181 = arith.divf %179, %180 : vector<8x32xf32>
    %182 = vector.extract_strided_slice %169 {offsets = [0, 64], sizes = [8, 32], strides = [1, 1]} : vector<8x128xf32> to vector<8x32xf32>
    %183 = math.tanh %182 : vector<8x32xf32>
    %184 = vector.extract_strided_slice %169 {offsets = [0, 96], sizes = [8, 32], strides = [1, 1]} : vector<8x128xf32> to vector<8x32xf32>
    %185 = arith.negf %184 : vector<8x32xf32>
    %186 = math.exp %185 : vector<8x32xf32>
    %cst_85 = arith.constant 1.000000e+00 : f32
    %187 = vector.broadcast %cst_85 : f32 to vector<8x32xf32>
    %188 = arith.addf %187, %186 : vector<8x32xf32>
    %189 = arith.divf %187, %188 : vector<8x32xf32>
    %c0_86 = arith.constant 0 : index
    %c0_87 = arith.constant 0 : index
    %190 = vector.load %arg9[%c0_86, %c0_87] : memref<8x32xf32, #tpu.memory_space<vmem>>, vector<8x32xf32>
    %191 = arith.mulf %181, %190 : vector<8x32xf32>
    %192 = arith.mulf %175, %183 : vector<8x32xf32>
    %193 = arith.addf %191, %192 : vector<8x32xf32>
    %194 = math.tanh %193 : vector<8x32xf32>
    %195 = arith.mulf %189, %194 : vector<8x32xf32>
    %c0_88 = arith.constant 0 : index
    %c0_89 = arith.constant 0 : index
    %196 = vector.load %arg9[%c0_88, %c0_89] : memref<8x32xf32, #tpu.memory_space<vmem>>, vector<8x32xf32>
    tpu.vector_store %arg9[%c0_88, %c0_89], %193 {strides = array<i32>} : memref<8x32xf32, #tpu.memory_space<vmem>>, vector<8x32xf32>,
    %c0_90 = arith.constant 0 : index
    %c0_91 = arith.constant 0 : index
    %197 = vector.load %arg8[%c0_90, %c0_91] : memref<8x32xf32, #tpu.memory_space<vmem>>, vector<8x32xf32>
    tpu.vector_store %arg8[%c0_90, %c0_91], %195 {strides = array<i32>} : memref<8x32xf32, #tpu.memory_space<vmem>>, vector<8x32xf32>,
    %198 = arith.index_cast %163 : i32 to index
    %c0_92 = arith.constant 0 : index
    %199 = vector.load %arg5[%198, %c0_92] : memref<64x32xf32, #tpu.memory_space<vmem>>, vector<8x32xf32>
    tpu.vector_store %arg5[%198, %c0_92], %195 {strides = array<i32>} : memref<64x32xf32, #tpu.memory_space<vmem>>, vector<8x32xf32>,
    %c5_i32 = arith.constant 5 : i32
    %c8_i32_93 = arith.constant 8 : i32
    %200 = arith.muli %c5_i32, %c8_i32_93 : i32
    %201 = tpu.assume_multiple %200, 8 : i32
    %202 = arith.index_cast %201 : i32 to index
    %c0_94 = arith.constant 0 : index
    %203 = vector.load %arg10[%202, %c0_94] : memref<64x128xf32, #tpu.memory_space<vmem>>, vector<8x128xf32>
    %c0_95 = arith.constant 0 : index
    %c0_96 = arith.constant 0 : index
    %204 = vector.load %arg8[%c0_95, %c0_96] : memref<8x32xf32, #tpu.memory_space<vmem>>, vector<8x32xf32>
    %c0_97 = arith.constant 0 : index
    %c0_98 = arith.constant 0 : index
    %205 = vector.load %arg3[%c0_97, %c0_98] : memref<32x128xf32, #tpu.memory_space<vmem>>, vector<32x128xf32>
    %cst_99 = arith.constant dense<0.000000e+00> : vector<8x128xf32>
    %206 = tpu.matmul %204, %205, %cst_99 {dimension_numbers = #tpu.dot_dimension_numbers<[1], [0], [0], [1], [0, 0, 1, 1], [], []>} : vector<8x32xf32>, vector<32x128xf32>, vector<8x128xf32> -> vector<8x128xf32>
    %207 = arith.addf %203, %206 : vector<8x128xf32>
    %208 = vector.extract_strided_slice %207 {offsets = [0, 0], sizes = [8, 32], strides = [1, 1]} : vector<8x128xf32> to vector<8x32xf32>
    %209 = arith.negf %208 : vector<8x32xf32>
    %210 = math.exp %209 : vector<8x32xf32>
    %cst_100 = arith.constant 1.000000e+00 : f32
    %211 = vector.broadcast %cst_100 : f32 to vector<8x32xf32>
    %212 = arith.addf %211, %210 : vector<8x32xf32>
    %213 = arith.divf %211, %212 : vector<8x32xf32>
    %214 = vector.extract_strided_slice %207 {offsets = [0, 32], sizes = [8, 32], strides = [1, 1]} : vector<8x128xf32> to vector<8x32xf32>
    %215 = arith.negf %214 : vector<8x32xf32>
    %216 = math.exp %215 : vector<8x32xf32>
    %cst_101 = arith.constant 1.000000e+00 : f32
    %217 = vector.broadcast %cst_101 : f32 to vector<8x32xf32>
    %218 = arith.addf %217, %216 : vector<8x32xf32>
    %219 = arith.divf %217, %218 : vector<8x32xf32>
    %220 = vector.extract_strided_slice %207 {offsets = [0, 64], sizes = [8, 32], strides = [1, 1]} : vector<8x128xf32> to vector<8x32xf32>
    %221 = math.tanh %220 : vector<8x32xf32>
    %222 = vector.extract_strided_slice %207 {offsets = [0, 96], sizes = [8, 32], strides = [1, 1]} : vector<8x128xf32> to vector<8x32xf32>
    %223 = arith.negf %222 : vector<8x32xf32>
    %224 = math.exp %223 : vector<8x32xf32>
    %cst_102 = arith.constant 1.000000e+00 : f32
    %225 = vector.broadcast %cst_102 : f32 to vector<8x32xf32>
    %226 = arith.addf %225, %224 : vector<8x32xf32>
    %227 = arith.divf %225, %226 : vector<8x32xf32>
    %c0_103 = arith.constant 0 : index
    %c0_104 = arith.constant 0 : index
    %228 = vector.load %arg9[%c0_103, %c0_104] : memref<8x32xf32, #tpu.memory_space<vmem>>, vector<8x32xf32>
    %229 = arith.mulf %219, %228 : vector<8x32xf32>
    %230 = arith.mulf %213, %221 : vector<8x32xf32>
    %231 = arith.addf %229, %230 : vector<8x32xf32>
    %232 = math.tanh %231 : vector<8x32xf32>
    %233 = arith.mulf %227, %232 : vector<8x32xf32>
    %c0_105 = arith.constant 0 : index
    %c0_106 = arith.constant 0 : index
    %234 = vector.load %arg9[%c0_105, %c0_106] : memref<8x32xf32, #tpu.memory_space<vmem>>, vector<8x32xf32>
    tpu.vector_store %arg9[%c0_105, %c0_106], %231 {strides = array<i32>} : memref<8x32xf32, #tpu.memory_space<vmem>>, vector<8x32xf32>,
    %c0_107 = arith.constant 0 : index
    %c0_108 = arith.constant 0 : index
    %235 = vector.load %arg8[%c0_107, %c0_108] : memref<8x32xf32, #tpu.memory_space<vmem>>, vector<8x32xf32>
    tpu.vector_store %arg8[%c0_107, %c0_108], %233 {strides = array<i32>} : memref<8x32xf32, #tpu.memory_space<vmem>>, vector<8x32xf32>,
    %236 = arith.index_cast %201 : i32 to index
    %c0_109 = arith.constant 0 : index
    %237 = vector.load %arg5[%236, %c0_109] : memref<64x32xf32, #tpu.memory_space<vmem>>, vector<8x32xf32>
    tpu.vector_store %arg5[%236, %c0_109], %233 {strides = array<i32>} : memref<64x32xf32, #tpu.memory_space<vmem>>, vector<8x32xf32>,
    %c6_i32 = arith.constant 6 : i32
    %c8_i32_110 = arith.constant 8 : i32
    %238 = arith.muli %c6_i32, %c8_i32_110 : i32
    %239 = tpu.assume_multiple %238, 8 : i32
    %240 = arith.index_cast %239 : i32 to index
    %c0_111 = arith.constant 0 : index
    %241 = vector.load %arg10[%240, %c0_111] : memref<64x128xf32, #tpu.memory_space<vmem>>, vector<8x128xf32>
    %c0_112 = arith.constant 0 : index
    %c0_113 = arith.constant 0 : index
    %242 = vector.load %arg8[%c0_112, %c0_113] : memref<8x32xf32, #tpu.memory_space<vmem>>, vector<8x32xf32>
    %c0_114 = arith.constant 0 : index
    %c0_115 = arith.constant 0 : index
    %243 = vector.load %arg3[%c0_114, %c0_115] : memref<32x128xf32, #tpu.memory_space<vmem>>, vector<32x128xf32>
    %cst_116 = arith.constant dense<0.000000e+00> : vector<8x128xf32>
    %244 = tpu.matmul %242, %243, %cst_116 {dimension_numbers = #tpu.dot_dimension_numbers<[1], [0], [0], [1], [0, 0, 1, 1], [], []>} : vector<8x32xf32>, vector<32x128xf32>, vector<8x128xf32> -> vector<8x128xf32>
    %245 = arith.addf %241, %244 : vector<8x128xf32>
    %246 = vector.extract_strided_slice %245 {offsets = [0, 0], sizes = [8, 32], strides = [1, 1]} : vector<8x128xf32> to vector<8x32xf32>
    %247 = arith.negf %246 : vector<8x32xf32>
    %248 = math.exp %247 : vector<8x32xf32>
    %cst_117 = arith.constant 1.000000e+00 : f32
    %249 = vector.broadcast %cst_117 : f32 to vector<8x32xf32>
    %250 = arith.addf %249, %248 : vector<8x32xf32>
    %251 = arith.divf %249, %250 : vector<8x32xf32>
    %252 = vector.extract_strided_slice %245 {offsets = [0, 32], sizes = [8, 32], strides = [1, 1]} : vector<8x128xf32> to vector<8x32xf32>
    %253 = arith.negf %252 : vector<8x32xf32>
    %254 = math.exp %253 : vector<8x32xf32>
    %cst_118 = arith.constant 1.000000e+00 : f32
    %255 = vector.broadcast %cst_118 : f32 to vector<8x32xf32>
    %256 = arith.addf %255, %254 : vector<8x32xf32>
    %257 = arith.divf %255, %256 : vector<8x32xf32>
    %258 = vector.extract_strided_slice %245 {offsets = [0, 64], sizes = [8, 32], strides = [1, 1]} : vector<8x128xf32> to vector<8x32xf32>
    %259 = math.tanh %258 : vector<8x32xf32>
    %260 = vector.extract_strided_slice %245 {offsets = [0, 96], sizes = [8, 32], strides = [1, 1]} : vector<8x128xf32> to vector<8x32xf32>
    %261 = arith.negf %260 : vector<8x32xf32>
    %262 = math.exp %261 : vector<8x32xf32>
    %cst_119 = arith.constant 1.000000e+00 : f32
    %263 = vector.broadcast %cst_119 : f32 to vector<8x32xf32>
    %264 = arith.addf %263, %262 : vector<8x32xf32>
    %265 = arith.divf %263, %264 : vector<8x32xf32>
    %c0_120 = arith.constant 0 : index
    %c0_121 = arith.constant 0 : index
    %266 = vector.load %arg9[%c0_120, %c0_121] : memref<8x32xf32, #tpu.memory_space<vmem>>, vector<8x32xf32>
    %267 = arith.mulf %257, %266 : vector<8x32xf32>
    %268 = arith.mulf %251, %259 : vector<8x32xf32>
    %269 = arith.addf %267, %268 : vector<8x32xf32>
    %270 = math.tanh %269 : vector<8x32xf32>
    %271 = arith.mulf %265, %270 : vector<8x32xf32>
    %c0_122 = arith.constant 0 : index
    %c0_123 = arith.constant 0 : index
    %272 = vector.load %arg9[%c0_122, %c0_123] : memref<8x32xf32, #tpu.memory_space<vmem>>, vector<8x32xf32>
    tpu.vector_store %arg9[%c0_122, %c0_123], %269 {strides = array<i32>} : memref<8x32xf32, #tpu.memory_space<vmem>>, vector<8x32xf32>,
    %c0_124 = arith.constant 0 : index
    %c0_125 = arith.constant 0 : index
    %273 = vector.load %arg8[%c0_124, %c0_125] : memref<8x32xf32, #tpu.memory_space<vmem>>, vector<8x32xf32>
    tpu.vector_store %arg8[%c0_124, %c0_125], %271 {strides = array<i32>} : memref<8x32xf32, #tpu.memory_space<vmem>>, vector<8x32xf32>,
    %274 = arith.index_cast %239 : i32 to index
    %c0_126 = arith.constant 0 : index
    %275 = vector.load %arg5[%274, %c0_126] : memref<64x32xf32, #tpu.memory_space<vmem>>, vector<8x32xf32>
    tpu.vector_store %arg5[%274, %c0_126], %271 {strides = array<i32>} : memref<64x32xf32, #tpu.memory_space<vmem>>, vector<8x32xf32>,
    %c7_i32 = arith.constant 7 : i32
    %c8_i32_127 = arith.constant 8 : i32
    %276 = arith.muli %c7_i32, %c8_i32_127 : i32
    %277 = tpu.assume_multiple %276, 8 : i32
    %278 = arith.index_cast %277 : i32 to index
    %c0_128 = arith.constant 0 : index
    %279 = vector.load %arg10[%278, %c0_128] : memref<64x128xf32, #tpu.memory_space<vmem>>, vector<8x128xf32>
    %c0_129 = arith.constant 0 : index
    %c0_130 = arith.constant 0 : index
    %280 = vector.load %arg8[%c0_129, %c0_130] : memref<8x32xf32, #tpu.memory_space<vmem>>, vector<8x32xf32>
    %c0_131 = arith.constant 0 : index
    %c0_132 = arith.constant 0 : index
    %281 = vector.load %arg3[%c0_131, %c0_132] : memref<32x128xf32, #tpu.memory_space<vmem>>, vector<32x128xf32>
    %cst_133 = arith.constant dense<0.000000e+00> : vector<8x128xf32>
    %282 = tpu.matmul %280, %281, %cst_133 {dimension_numbers = #tpu.dot_dimension_numbers<[1], [0], [0], [1], [0, 0, 1, 1], [], []>} : vector<8x32xf32>, vector<32x128xf32>, vector<8x128xf32> -> vector<8x128xf32>
    %283 = arith.addf %279, %282 : vector<8x128xf32>
    %284 = vector.extract_strided_slice %283 {offsets = [0, 0], sizes = [8, 32], strides = [1, 1]} : vector<8x128xf32> to vector<8x32xf32>
    %285 = arith.negf %284 : vector<8x32xf32>
    %286 = math.exp %285 : vector<8x32xf32>
    %cst_134 = arith.constant 1.000000e+00 : f32
    %287 = vector.broadcast %cst_134 : f32 to vector<8x32xf32>
    %288 = arith.addf %287, %286 : vector<8x32xf32>
    %289 = arith.divf %287, %288 : vector<8x32xf32>
    %290 = vector.extract_strided_slice %283 {offsets = [0, 32], sizes = [8, 32], strides = [1, 1]} : vector<8x128xf32> to vector<8x32xf32>
    %291 = arith.negf %290 : vector<8x32xf32>
    %292 = math.exp %291 : vector<8x32xf32>
    %cst_135 = arith.constant 1.000000e+00 : f32
    %293 = vector.broadcast %cst_135 : f32 to vector<8x32xf32>
    %294 = arith.addf %293, %292 : vector<8x32xf32>
    %295 = arith.divf %293, %294 : vector<8x32xf32>
    %296 = vector.extract_strided_slice %283 {offsets = [0, 64], sizes = [8, 32], strides = [1, 1]} : vector<8x128xf32> to vector<8x32xf32>
    %297 = math.tanh %296 : vector<8x32xf32>
    %298 = vector.extract_strided_slice %283 {offsets = [0, 96], sizes = [8, 32], strides = [1, 1]} : vector<8x128xf32> to vector<8x32xf32>
    %299 = arith.negf %298 : vector<8x32xf32>
    %300 = math.exp %299 : vector<8x32xf32>
    %cst_136 = arith.constant 1.000000e+00 : f32
    %301 = vector.broadcast %cst_136 : f32 to vector<8x32xf32>
    %302 = arith.addf %301, %300 : vector<8x32xf32>
    %303 = arith.divf %301, %302 : vector<8x32xf32>
    %c0_137 = arith.constant 0 : index
    %c0_138 = arith.constant 0 : index
    %304 = vector.load %arg9[%c0_137, %c0_138] : memref<8x32xf32, #tpu.memory_space<vmem>>, vector<8x32xf32>
    %305 = arith.mulf %295, %304 : vector<8x32xf32>
    %306 = arith.mulf %289, %297 : vector<8x32xf32>
    %307 = arith.addf %305, %306 : vector<8x32xf32>
    %308 = math.tanh %307 : vector<8x32xf32>
    %309 = arith.mulf %303, %308 : vector<8x32xf32>
    %c0_139 = arith.constant 0 : index
    %c0_140 = arith.constant 0 : index
    %310 = vector.load %arg9[%c0_139, %c0_140] : memref<8x32xf32, #tpu.memory_space<vmem>>, vector<8x32xf32>
    tpu.vector_store %arg9[%c0_139, %c0_140], %307 {strides = array<i32>} : memref<8x32xf32, #tpu.memory_space<vmem>>, vector<8x32xf32>,
    %c0_141 = arith.constant 0 : index
    %c0_142 = arith.constant 0 : index
    %311 = vector.load %arg8[%c0_141, %c0_142] : memref<8x32xf32, #tpu.memory_space<vmem>>, vector<8x32xf32>
    tpu.vector_store %arg8[%c0_141, %c0_142], %309 {strides = array<i32>} : memref<8x32xf32, #tpu.memory_space<vmem>>, vector<8x32xf32>,
    %312 = arith.index_cast %277 : i32 to index
    %c0_143 = arith.constant 0 : index
    %313 = vector.load %arg5[%312, %c0_143] : memref<64x32xf32, #tpu.memory_space<vmem>>, vector<8x32xf32>
    tpu.vector_store %arg5[%312, %c0_143], %309 {strides = array<i32>} : memref<64x32xf32, #tpu.memory_space<vmem>>, vector<8x32xf32>,
    %c8_i32_144 = arith.constant 8 : i32
    %c0_i32_145 = arith.constant 0 : i32
    %314 = arith.cmpi eq, %arg0, %c0_i32_145 : i32
    %315 = arith.extui %314 : i1 to i32
    %c0_i32_146 = arith.constant 0 : i32
    %316 = arith.cmpi ne, %315, %c0_i32_146 : i32
    scf.if %316 {
      %c0_147 = arith.constant 0 : index
      %c0_148 = arith.constant 0 : index
      %317 = vector.load %arg8[%c0_147, %c0_148] : memref<8x32xf32, #tpu.memory_space<vmem>>, vector<8x32xf32>
      %c0_149 = arith.constant 0 : index
      %c0_150 = arith.constant 0 : index
      %318 = vector.load %arg6[%c0_149, %c0_150] : memref<8x32xf32, #tpu.memory_space<vmem>>, vector<8x32xf32>
      tpu.vector_store %arg6[%c0_149, %c0_150], %317 {strides = array<i32>} : memref<8x32xf32, #tpu.memory_space<vmem>>, vector<8x32xf32>,
      %c0_151 = arith.constant 0 : index
      %c0_152 = arith.constant 0 : index
      %319 = vector.load %arg9[%c0_151, %c0_152] : memref<8x32xf32, #tpu.memory_space<vmem>>, vector<8x32xf32>
      %c0_153 = arith.constant 0 : index
      %c0_154 = arith.constant 0 : index
      %320 = vector.load %arg7[%c0_153, %c0_154] : memref<8x32xf32, #tpu.memory_space<vmem>>, vector<8x32xf32>
      tpu.vector_store %arg7[%c0_153, %c0_154], %319 {strides = array<i32>} : memref<8x32xf32, #tpu.memory_space<vmem>>, vector<8x32xf32>,
    } else {
    }
    return
  }
  func.func @transform_0(%arg0: i32) -> (i32, i32) {
    %c0_i32 = arith.constant 0 : i32
    %c0_i32_0 = arith.constant 0 : i32
    return %arg0, %c0_i32 : i32, i32
  }
  func.func @transform_1(%arg0: i32) -> (i32, i32) {
    %c0_i32 = arith.constant 0 : i32
    %c0_i32_0 = arith.constant 0 : i32
    %c0_i32_1 = arith.constant 0 : i32
    return %c0_i32, %c0_i32_0 : i32, i32
  }
  func.func @transform_2(%arg0: i32) -> (i32, i32) {
    %c0_i32 = arith.constant 0 : i32
    %c0_i32_0 = arith.constant 0 : i32
    %c0_i32_1 = arith.constant 0 : i32
    return %c0_i32, %c0_i32_0 : i32, i32
  }
  func.func @transform_3(%arg0: i32) -> (i32, i32) {
    %c0_i32 = arith.constant 0 : i32
    %c0_i32_0 = arith.constant 0 : i32
    %c0_i32_1 = arith.constant 0 : i32
    return %c0_i32, %c0_i32_0 : i32, i32
  }
  func.func @transform_4(%arg0: i32) -> (i32, i32) {
    %c0_i32 = arith.constant 0 : i32
    %c0_i32_0 = arith.constant 0 : i32
    return %arg0, %c0_i32 : i32, i32
  }
  func.func @transform_5(%arg0: i32) -> (i32, i32) {
    %c0_i32 = arith.constant 0 : i32
    %c0_i32_0 = arith.constant 0 : i32
    %c0_i32_1 = arith.constant 0 : i32
    return %c0_i32, %c0_i32_0 : i32, i32
  }
  func.func @transform_6(%arg0: i32) -> (i32, i32) {
    %c0_i32 = arith.constant 0 : i32
    %c0_i32_0 = arith.constant 0 : i32
    %c0_i32_1 = arith.constant 0 : i32
    return %c0_i32, %c0_i32_0 : i32, i32
  }
}

</mosaic_0001>

<llo_original>
// kernel: tpu_custom_call.1
$region0: #{tpu_custom_call.1}
  #allocation0 [shape = 'u32[]', space=smem, size = 0x4, offset = 0x4, fixed_abs, tag = 'smem constant byte address 0x4 - core index']
  #allocation1 [shape = 'u32[144,128]{1,0:T(1,128)}', space=vmem, size = 0x12000, scoped, tag = 'internal scratch']
  #allocation2 [shape = 'f32[8,32]{1,0:T(8,128)}', space=vmem, size = 0x1000, scoped, tag = 'scratch operand']
  #allocation3 [shape = 'f32[8,32]{1,0:T(8,128)}', space=vmem, size = 0x1000, scoped, tag = 'scratch operand']
  #allocation4 [shape = 'f32[64,128]{1,0:T(8,128)}', space=vmem, size = 0x8000, scoped, tag = 'scratch operand']
  %s0 = inlined_call_operand.vmem [shape: f32[64,8], index: 0, kind: input, shape index: {}]
  %s1 = inlined_call_operand.vmem [shape: f32[8,128], index: 1, kind: input, shape index: {}]
  %s2 = inlined_call_operand.vmem [shape: f32[32,128], index: 2, kind: input, shape index: {}]
  %s3 = inlined_call_operand.vmem [shape: f32[1,128], index: 3, kind: input, shape index: {}]
  %s4 = inlined_call_operand.vmem [shape: f32[64,32], index: 4, kind: output, shape index: {0}]
  %s5 = inlined_call_operand.hbm [shape: f32[8,32], index: 5, kind: output, shape index: {1}]
  %s6 = inlined_call_operand.hbm [shape: f32[8,32], index: 6, kind: output, shape index: {2}]
  %7 = xla_tuple %s4, %s5, %s6
  %s8 = sld [smem:[#allocation0]]
  $region50: #{tpu_custom_call.1} parent=0
    _
  %s10 = ssub.s32 1, %s8
  %s11 = scalar_select 0, %s10, %s8
  $region1: #{tpu_custom_call.1} parent=0
    #allocation5 [shape = 'u8[4096]{0}', space=vmem, size = 0x1000, scoped, tag = 'output window, operand 1, single buffered']
    #allocation6 [shape = 's32[1]{0}', space=sflag, size = 0x4, scoped, tag = 'scoped memory for tpu_custom_call.1']
    #allocation7 [shape = 'u8[4096]{0}', space=vmem, size = 0x1000, scoped, tag = 'output window, operand 2, single buffered']
    #allocation8 [shape = 's32[1]{0}', space=sflag, size = 0x4, scoped, tag = 'scoped memory for tpu_custom_call.1']
    %12 = vsyncpa [#allocation6], 0
    %13 = vsyncpa [#allocation8], 0
    // Predicated region
    $region2: #{tpu_custom_call.1} parent=1 // pred_check
      _
    $region3: #{tpu_custom_call.1} parent=1 // pred_check_branch
      %15 = sbr.rel (0) target = $region5
    $region4: #{tpu_custom_call.1} parent=1 // pred_region
      _
    $region5: #{tpu_custom_call.1} parent=1 // pred_fallthru
      _
    // Predicated region
    $region6: #{tpu_custom_call.1} parent=1 // pred_check
      _
    $region7: #{tpu_custom_call.1} parent=1 // pred_check_branch
      %17 = sbr.rel (0) target = $region9
    $region8: #{tpu_custom_call.1} parent=1 // pred_region
      _
    $region9: #{tpu_custom_call.1} parent=1 // pred_fallthru
      _
    // Predicated region
    $region10: #{tpu_custom_call.1} parent=1 // pred_check
      _
    $region11: #{tpu_custom_call.1} parent=1 // pred_check_branch
      %19 = sbr.rel (0) target = $region13
    $region12: #{tpu_custom_call.1} parent=1 // pred_region
      _
    $region13: #{tpu_custom_call.1} parent=1 // pred_fallthru
      _
    // Predicated region
    $region14: #{tpu_custom_call.1} parent=1 // pred_check
      _
    $region15: #{tpu_custom_call.1} parent=1 // pred_check_branch
      %21 = sbr.rel (0) target = $region17
    $region16: #{tpu_custom_call.1} parent=1 // pred_region
      _
    $region17: #{tpu_custom_call.1} parent=1 // pred_fallthru
      _
    %p22 = scmp.eq.s32.totalorder 0, 0
    // Predicated region
    $region18: #{tpu_custom_call.1} parent=1 // pred_check
      %p23 = pneg %p22
    $region19: #{tpu_custom_call.1} parent=1 // pred_check_branch
      %25 = sbr.rel (%p23) target = $region21
    $region20: #{tpu_custom_call.1} parent=1 // pred_region
      %vm26 = vcmask 261120
      %27 = vst.msk [vmem:[#allocation2] sm:$0xff] %vm26, 0.0
      %28 = vst.msk [vmem:[#allocation3] sm:$0xff] %vm26, 0.0
      %29 = vst.msk [vmem:[#allocation5] sm:$0xff] %vm26, 0.0
      %30 = vst.msk [vmem:[#allocation7] sm:$0xff] %vm26, 0.0
    $region21: #{tpu_custom_call.1} parent=1 // pred_fallthru
      _
    %v31 = vld [vmem:[%s0] sm:$0xff]
    %v32 = vld [vmem:[%s0 + $0x8] sm:$0xff]
    %v33 = vld [vmem:[%s0 + $0x10] sm:$0xff]
    %v34 = vld [vmem:[%s0 + $0x18] sm:$0xff]
    %v35 = vld [vmem:[%s0 + $0x20] sm:$0xff]
    %v36 = vld [vmem:[%s0 + $0x28] sm:$0xff]
    %v37 = vld [vmem:[%s0 + $0x30] sm:$0xff]
    %v38 = vld [vmem:[%s0 + $0x38] sm:$0xff]
    %v39 = vld [vmem:[%s1] sm:$0xff]
    %v40 = vld [vmem:[%s3] sm:$0x1]
    %v42 = vlaneseq
    %v43 = vshrl.u32 %v42, 7
    %v44 = vsub.s32 0, %v43
    %v45 = vrot.slane %v40, %v44
    %vm47 = vcmask 64512
    %v49 = vsel %vm47, %v31, 0
    %v52 = vsel %vm47, %v32, 0
    %v55 = vsel %vm47, %v33, 0
    %v58 = vsel %vm47, %v34, 0
    %v61 = vsel %vm47, %v35, 0
    %v64 = vsel %vm47, %v36, 0
    %v67 = vsel %vm47, %v37, 0
    %v70 = vsel %vm47, %v38, 0
    %72 = vmatprep.subr.mxu0 0.0
    %73 = vmatpush1.msra.mxu0 %v39
    %74 = vmatprep.subr.mxu0 0.0
    %75 = vmatpush1.msra.mxu0 0.0
    %76 = vmatprep.subr.mxu0 0.0
    %77 = vmatpush1.msra.mxu0 0.0
    %78 = vmatprep.subr.mxu0 0.0
    %79 = vmatpush1.msra.mxu0 0.0
    %80 = vmatprep.subr.mxu0 0.0
    %81 = vmatpush1.msra.mxu0 0.0
    %82 = vmatprep.subr.mxu0 0.0
    %83 = vmatpush1.msra.mxu0 0.0
    %84 = vmatprep.subr.mxu0 0.0
    %85 = vmatpush1.msra.mxu0 0.0
    %86 = vmatprep.subr.mxu0 0.0
    %87 = vmatpush1.msra.mxu0 0.0
    %88 = vmatprep.subr.mxu0 0.0
    %89 = vmatpush1.msra.mxu0 0.0
    %90 = vmatprep.subr.mxu0 0.0
    %91 = vmatpush1.msra.mxu0 0.0
    %92 = vmatprep.subr.mxu0 0.0
    %93 = vmatpush1.msra.mxu0 0.0
    %94 = vmatprep.subr.mxu0 0.0
    %95 = vmatpush1.msra.mxu0 0.0
    %96 = vmatprep.subr.mxu0 0.0
    %97 = vmatpush1.msra.mxu0 0.0
    %98 = vmatprep.subr.mxu0 0.0
    %99 = vmatpush1.msra.mxu0 0.0
    %100 = vmatprep.subr.mxu0 0.0
    %101 = vmatpush1.msra.mxu0 0.0
    %102 = vmatprep.subr.mxu0 0.0
    %103 = vmatpush1.msra.mxu0 0.0
    %104 = vmatprep.subr.mxu0 0.0
    %105 = vmatpush1.msra.mxu0 0.0
    %106 = vmatprep.subr.mxu0 0.0
    %107 = vmatpush1.msra.mxu0 0.0
    %108 = vmatprep.subr.mxu0 0.0
    %109 = vmatpush1.msra.mxu0 0.0
    %110 = vmatprep.subr.mxu0 0.0
    %111 = vmatpush1.msra.mxu0 0.0
    %112 = vmatprep.subr.mxu0 0.0
    %113 = vmatpush1.msra.mxu0 0.0
    %114 = vmatprep.subr.mxu0 0.0
    %115 = vmatpush1.msra.mxu0 0.0
    %116 = vmatprep.subr.mxu0 0.0
    %117 = vmatpush1.msra.mxu0 0.0
    %118 = vmatprep.subr.mxu0 0.0
    %119 = vmatpush1.msra.mxu0 0.0
    %120 = vmatprep.subr.mxu0 0.0
    %121 = vmatpush1.msra.mxu0 0.0
    %122 = vmatprep.subr.mxu0 0.0
    %123 = vmatpush1.msra.mxu0 0.0
    %124 = vmatprep.subr.mxu0 0.0
    %125 = vmatpush1.msra.mxu0 0.0
    %126 = vmatprep.subr.mxu0 0.0
    %127 = vmatpush1.msra.mxu0 0.0
    %128 = vmatprep.subr.mxu0 0.0
    %129 = vmatpush1.msra.mxu0 0.0
    %130 = vmatprep.subr.mxu0 0.0
    %131 = vmatpush1.msra.mxu0 0.0
    %132 = vmatprep.subr.mxu0 0.0
    %133 = vmatpush1.msra.mxu0 0.0
    %134 = vmatprep.subr.mxu0 0.0
    %135 = vmatpush1.msra.mxu0 0.0
    %136 = vmatprep.mubr.f32.mxu0 0.0
    %137 = vmatmul.mubr.f32.gmra.mrb[0].mxu0 %v49
    %v138 = vpop.f32.mrb[0].mxu0
    %v139 = vadd.f32 %v45, %v138
    %v140 = vpop.f32.mrb[0].mxu0
    %141 = vmatprep.mubr.f32.mxu0 0.0
    %142 = vmatmul.mubr.f32.gmra.mrb[0].mxu0 %v52
    %v143 = vpop.f32.mrb[0].mxu0
    %v144 = vadd.f32 %v45, %v143
    %v145 = vpop.f32.mrb[0].mxu0
    %146 = vmatprep.mubr.f32.mxu0 0.0
    %147 = vmatmul.mubr.f32.gmra.mrb[0].mxu0 %v55
    %v148 = vpop.f32.mrb[0].mxu0
    %v149 = vadd.f32 %v45, %v148
    %v150 = vpop.f32.mrb[0].mxu0
    %151 = vmatprep.mubr.f32.mxu0 0.0
    %152 = vmatmul.mubr.f32.gmra.mrb[0].mxu0 %v58
    %v153 = vpop.f32.mrb[0].mxu0
    %v154 = vadd.f32 %v45, %v153
    %v155 = vpop.f32.mrb[0].mxu0
    %156 = vmatprep.mubr.f32.mxu0 0.0
    %157 = vmatmul.mubr.f32.gmra.mrb[0].mxu0 %v61
    %v158 = vpop.f32.mrb[0].mxu0
    %v159 = vadd.f32 %v45, %v158
    %v160 = vpop.f32.mrb[0].mxu0
    %161 = vmatprep.mubr.f32.mxu0 0.0
    %162 = vmatmul.mubr.f32.gmra.mrb[0].mxu0 %v64
    %v163 = vpop.f32.mrb[0].mxu0
    %v164 = vadd.f32 %v45, %v163
    %v165 = vpop.f32.mrb[0].mxu0
    %166 = vmatprep.mubr.f32.mxu0 0.0
    %167 = vmatmul.mubr.f32.gmra.mrb[0].mxu0 %v67
    %v168 = vpop.f32.mrb[0].mxu0
    %v169 = vadd.f32 %v45, %v168
    %v170 = vpop.f32.mrb[0].mxu0
    %171 = vmatprep.mubr.f32.mxu0 0.0
    %172 = vmatmul.mubr.f32.gmra.mrb[0].mxu0 %v70
    %v173 = vpop.f32.mrb[0].mxu0
    %v174 = vadd.f32 %v45, %v173
    %v175 = vpop.f32.mrb[0].mxu0
    %176 = vdwg.mxu0
    %177 = vst [vmem:[#allocation4] sm:$0xff] %v139
    %178 = vst [vmem:[#allocation4 + $0x8] sm:$0xff] %v144
    %179 = vst [vmem:[#allocation4 + $0x10] sm:$0xff] %v149
    %180 = vst [vmem:[#allocation4 + $0x18] sm:$0xff] %v154
    %181 = vst [vmem:[#allocation4 + $0x20] sm:$0xff] %v159
    %182 = vst [vmem:[#allocation4 + $0x28] sm:$0xff] %v164
    %183 = vst [vmem:[#allocation4 + $0x30] sm:$0xff] %v169
    %184 = vst [vmem:[#allocation4 + $0x38] sm:$0xff] %v174
    %v185 = vld [vmem:[#allocation4] sm:$0xff]
    %v186 = vld [vmem:[#allocation2] sm:$0xff]
    %v187 = vld [vmem:[%s2] sm:$0xff]
    %v188 = vld [vmem:[%s2 + $0x8] sm:$0xff]
    %v189 = vld [vmem:[%s2 + $0x10] sm:$0xff]
    %v190 = vld [vmem:[%s2 + $0x18] sm:$0xff]
    %vm191 = vcmask 261120
    %v193 = vsel %vm191, %v186, 0
    %195 = vmatprep.subr.mxu0 0.0
    %196 = vmatpush1.msra.mxu0 %v187
    %197 = vmatprep.subr.mxu0 0.0
    %198 = vmatpush1.msra.mxu0 %v188
    %199 = vmatprep.subr.mxu0 0.0
    %200 = vmatpush1.msra.mxu0 %v189
    %201 = vmatprep.subr.mxu0 0.0
    %202 = vmatpush1.msra.mxu0 %v190
    %203 = vmatprep.subr.mxu0 0.0
    %204 = vmatpush1.msra.mxu0 0.0
    %205 = vmatprep.subr.mxu0 0.0
    %206 = vmatpush1.msra.mxu0 0.0
    %207 = vmatprep.subr.mxu0 0.0
    %208 = vmatpush1.msra.mxu0 0.0
    %209 = vmatprep.subr.mxu0 0.0
    %210 = vmatpush1.msra.mxu0 0.0
    %211 = vmatprep.subr.mxu0 0.0
    %212 = vmatpush1.msra.mxu0 0.0
    %213 = vmatprep.subr.mxu0 0.0
    %214 = vmatpush1.msra.mxu0 0.0
    %215 = vmatprep.subr.mxu0 0.0
    %216 = vmatpush1.msra.mxu0 0.0
    %217 = vmatprep.subr.mxu0 0.0
    %218 = vmatpush1.msra.mxu0 0.0
    %219 = vmatprep.subr.mxu0 0.0
    %220 = vmatpush1.msra.mxu0 0.0
    %221 = vmatprep.subr.mxu0 0.0
    %222 = vmatpush1.msra.mxu0 0.0
    %223 = vmatprep.subr.mxu0 0.0
    %224 = vmatpush1.msra.mxu0 0.0
    %225 = vmatprep.subr.mxu0 0.0
    %226 = vmatpush1.msra.mxu0 0.0
    %227 = vmatprep.subr.mxu0 0.0
    %228 = vmatpush1.msra.mxu0 0.0
    %229 = vmatprep.subr.mxu0 0.0
    %230 = vmatpush1.msra.mxu0 0.0
    %231 = vmatprep.subr.mxu0 0.0
    %232 = vmatpush1.msra.mxu0 0.0
    %233 = vmatprep.subr.mxu0 0.0
    %234 = vmatpush1.msra.mxu0 0.0
    %235 = vmatprep.subr.mxu0 0.0
    %236 = vmatpush1.msra.mxu0 0.0
    %237 = vmatprep.subr.mxu0 0.0
    %238 = vmatpush1.msra.mxu0 0.0
    %239 = vmatprep.subr.mxu0 0.0
    %240 = vmatpush1.msra.mxu0 0.0
    %241 = vmatprep.subr.mxu0 0.0
    %242 = vmatpush1.msra.mxu0 0.0
    %243 = vmatprep.subr.mxu0 0.0
    %244 = vmatpush1.msra.mxu0 0.0
    %245 = vmatprep.subr.mxu0 0.0
    %246 = vmatpush1.msra.mxu0 0.0
    %247 = vmatprep.subr.mxu0 0.0
    %248 = vmatpush1.msra.mxu0 0.0
    %249 = vmatprep.subr.mxu0 0.0
    %250 = vmatpush1.msra.mxu0 0.0
    %251 = vmatprep.subr.mxu0 0.0
    %252 = vmatpush1.msra.mxu0 0.0
    %253 = vmatprep.subr.mxu0 0.0
    %254 = vmatpush1.msra.mxu0 0.0
    %255 = vmatprep.subr.mxu0 0.0
    %256 = vmatpush1.msra.mxu0 0.0
    %257 = vmatprep.subr.mxu0 0.0
    %258 = vmatpush1.msra.mxu0 0.0
    %259 = vmatprep.mubr.f32.mxu0 0.0
    %260 = vmatmul.mubr.f32.gmra.mrb[0].mxu0 %v193
    %v261 = vpop.f32.mrb[0].mxu0
    %v262 = vadd.f32 0.0, %v261
    %v263 = vpop.f32.mrb[0].mxu0
    %264 = vdwg.mxu0
    %v265 = vadd.f32 %v185, %v262
    %v266 = vxor.u32 %v265, 2147483648
    %v267 = vmul.f32 %v266, 1.442695
    %v268 = vpow.pop %v267
    %v269 = vadd.f32 %v268, 1.0
    %v270 = vrcp.pop %v269
    %v271 = vmul.f32 1.0, %v270
    %v272 = vtanh.pop %v265
    %v273 = vld [vmem:[#allocation3] sm:$0xff]
    %275 = vrot.lane.b32.xlu0 %v273, 32
    %v276 = vpop.permute.xlu0 %275
    %v278 = vmul.f32 %v271, %v276
    %280 = vrot.lane.b32.xlu0 %v272, 64
    %v281 = vpop.permute.xlu0 %280
    %v283 = vmul.f32 %v271, %v281
    %285 = vrot.lane.b32.xlu0 %v283, 32
    %v286 = vpop.permute.xlu0 %285
    %v288 = vadd.f32 %v278, %v286
    %v289 = vtanh.pop %v288
    %291 = vrot.lane.b32.xlu0 %v289, 64
    %v292 = vpop.permute.xlu0 %291
    %v294 = vmul.f32 %v271, %v292
    %296 = vrot.lane.b32.xlu0 %v288, 96
    %v297 = vpop.permute.xlu0 %296
    %299 = vst.msk [vmem:[#allocation3] sm:$0xff] %vm191, %v297
    %301 = vrot.lane.b32.xlu0 %v294, 32
    %v302 = vpop.permute.xlu0 %301
    %304 = vst.msk [vmem:[#allocation2] sm:$0xff] %vm191, %v302
    %305 = vst.msk [vmem:[%s4] sm:$0xff] %vm191, %v302
    %s306 = scalar_lea.vmem [#allocation4], 8
    %v307 = vld [vmem:[%s306] sm:$0xff]
    %v308 = vld [vmem:[#allocation2] sm:$0xff]
    %v309 = vld [vmem:[%s2] sm:$0xff]
    %v310 = vld [vmem:[%s2 + $0x8] sm:$0xff]
    %v311 = vld [vmem:[%s2 + $0x10] sm:$0xff]
    %v312 = vld [vmem:[%s2 + $0x18] sm:$0xff]
    %v314 = vsel %vm191, %v308, 0
    %316 = vmatprep.subr.mxu0 0.0
    %317 = vmatpush1.msra.mxu0 %v309
    %318 = vmatprep.subr.mxu0 0.0
    %319 = vmatpush1.msra.mxu0 %v310
    %320 = vmatprep.subr.mxu0 0.0
    %321 = vmatpush1.msra.mxu0 %v311
    %322 = vmatprep.subr.mxu0 0.0
    %323 = vmatpush1.msra.mxu0 %v312
    %324 = vmatprep.subr.mxu0 0.0
    %325 = vmatpush1.msra.mxu0 0.0
    %326 = vmatprep.subr.mxu0 0.0
    %327 = vmatpush1.msra.mxu0 0.0
    %328 = vmatprep.subr.mxu0 0.0
    %329 = vmatpush1.msra.mxu0 0.0
    %330 = vmatprep.subr.mxu0 0.0
    %331 = vmatpush1.msra.mxu0 0.0
    %332 = vmatprep.subr.mxu0 0.0
    %333 = vmatpush1.msra.mxu0 0.0
    %334 = vmatprep.subr.mxu0 0.0
    %335 = vmatpush1.msra.mxu0 0.0
    %336 = vmatprep.subr.mxu0 0.0
    %337 = vmatpush1.msra.mxu0 0.0
    %338 = vmatprep.subr.mxu0 0.0
    %339 = vmatpush1.msra.mxu0 0.0
    %340 = vmatprep.subr.mxu0 0.0
    %341 = vmatpush1.msra.mxu0 0.0
    %342 = vmatprep.subr.mxu0 0.0
    %343 = vmatpush1.msra.mxu0 0.0
    %344 = vmatprep.subr.mxu0 0.0
    %345 = vmatpush1.msra.mxu0 0.0
    %346 = vmatprep.subr.mxu0 0.0
    %347 = vmatpush1.msra.mxu0 0.0
    %348 = vmatprep.subr.mxu0 0.0
    %349 = vmatpush1.msra.mxu0 0.0
    %350 = vmatprep.subr.mxu0 0.0
    %351 = vmatpush1.msra.mxu0 0.0
    %352 = vmatprep.subr.mxu0 0.0
    %353 = vmatpush1.msra.mxu0 0.0
    %354 = vmatprep.subr.mxu0 0.0
    %355 = vmatpush1.msra.mxu0 0.0
    %356 = vmatprep.subr.mxu0 0.0
    %357 = vmatpush1.msra.mxu0 0.0
    %358 = vmatprep.subr.mxu0 0.0
    %359 = vmatpush1.msra.mxu0 0.0
    %360 = vmatprep.subr.mxu0 0.0
    %361 = vmatpush1.msra.mxu0 0.0
    %362 = vmatprep.subr.mxu0 0.0
    %363 = vmatpush1.msra.mxu0 0.0
    %364 = vmatprep.subr.mxu0 0.0
    %365 = vmatpush1.msra.mxu0 0.0
    %366 = vmatprep.subr.mxu0 0.0
    %367 = vmatpush1.msra.mxu0 0.0
    %368 = vmatprep.subr.mxu0 0.0
    %369 = vmatpush1.msra.mxu0 0.0
    %370 = vmatprep.subr.mxu0 0.0
    %371 = vmatpush1.msra.mxu0 0.0
    %372 = vmatprep.subr.mxu0 0.0
    %373 = vmatpush1.msra.mxu0 0.0
    %374 = vmatprep.subr.mxu0 0.0
    %375 = vmatpush1.msra.mxu0 0.0
    %376 = vmatprep.subr.mxu0 0.0
    %377 = vmatpush1.msra.mxu0 0.0
    %378 = vmatprep.subr.mxu0 0.0
    %379 = vmatpush1.msra.mxu0 0.0
    %380 = vmatprep.mubr.f32.mxu0 0.0
    %381 = vmatmul.mubr.f32.gmra.mrb[0].mxu0 %v314
    %v382 = vpop.f32.mrb[0].mxu0
    %v383 = vadd.f32 0.0, %v382
    %v384 = vpop.f32.mrb[0].mxu0
    %385 = vdwg.mxu0
    %v386 = vadd.f32 %v307, %v383
    %v387 = vxor.u32 %v386, 2147483648
    %v388 = vmul.f32 %v387, 1.442695
    %v389 = vpow.pop %v388
    %v390 = vadd.f32 %v389, 1.0
    %v391 = vrcp.pop %v390
    %v392 = vmul.f32 1.0, %v391
    %v393 = vtanh.pop %v386
    %v394 = vld [vmem:[#allocation3] sm:$0xff]
    %396 = vrot.lane.b32.xlu0 %v394, 32
    %v397 = vpop.permute.xlu0 %396
    %v399 = vmul.f32 %v392, %v397
    %401 = vrot.lane.b32.xlu0 %v393, 64
    %v402 = vpop.permute.xlu0 %401
    %v404 = vmul.f32 %v392, %v402
    %406 = vrot.lane.b32.xlu0 %v404, 32
    %v407 = vpop.permute.xlu0 %406
    %v409 = vadd.f32 %v399, %v407
    %v410 = vtanh.pop %v409
    %412 = vrot.lane.b32.xlu0 %v410, 64
    %v413 = vpop.permute.xlu0 %412
    %v415 = vmul.f32 %v392, %v413
    %417 = vrot.lane.b32.xlu0 %v409, 96
    %v418 = vpop.permute.xlu0 %417
    %420 = vst.msk [vmem:[#allocation3] sm:$0xff] %vm191, %v418
    %422 = vrot.lane.b32.xlu0 %v415, 32
    %v423 = vpop.permute.xlu0 %422
    %425 = vst.msk [vmem:[#allocation2] sm:$0xff] %vm191, %v423
    %s426 = scalar_lea.vmem %s4, 8
    %427 = vst.msk [vmem:[%s426] sm:$0xff] %vm191, %v423
    %s428 = scalar_lea.vmem [#allocation4], 16
    %v429 = vld [vmem:[%s428] sm:$0xff]
    %v430 = vld [vmem:[#allocation2] sm:$0xff]
    %v431 = vld [vmem:[%s2] sm:$0xff]
    %v432 = vld [vmem:[%s2 + $0x8] sm:$0xff]
    %v433 = vld [vmem:[%s2 + $0x10] sm:$0xff]
    %v434 = vld [vmem:[%s2 + $0x18] sm:$0xff]
    %v436 = vsel %vm191, %v430, 0
    %438 = vmatprep.subr.mxu0 0.0
    %439 = vmatpush1.msra.mxu0 %v431
    %440 = vmatprep.subr.mxu0 0.0
    %441 = vmatpush1.msra.mxu0 %v432
    %442 = vmatprep.subr.mxu0 0.0
    %443 = vmatpush1.msra.mxu0 %v433
    %444 = vmatprep.subr.mxu0 0.0
    %445 = vmatpush1.msra.mxu0 %v434
    %446 = vmatprep.subr.mxu0 0.0
    %447 = vmatpush1.msra.mxu0 0.0
    %448 = vmatprep.subr.mxu0 0.0
    %449 = vmatpush1.msra.mxu0 0.0
    %450 = vmatprep.subr.mxu0 0.0
    %451 = vmatpush1.msra.mxu0 0.0
    %452 = vmatprep.subr.mxu0 0.0
    %453 = vmatpush1.msra.mxu0 0.0
    %454 = vmatprep.subr.mxu0 0.0
    %455 = vmatpush1.msra.mxu0 0.0
    %456 = vmatprep.subr.mxu0 0.0
    %457 = vmatpush1.msra.mxu0 0.0
    %458 = vmatprep.subr.mxu0 0.0
    %459 = vmatpush1.msra.mxu0 0.0
    %460 = vmatprep.subr.mxu0 0.0
    %461 = vmatpush1.msra.mxu0 0.0
    %462 = vmatprep.subr.mxu0 0.0
    %463 = vmatpush1.msra.mxu0 0.0
    %464 = vmatprep.subr.mxu0 0.0
    %465 = vmatpush1.msra.mxu0 0.0
    %466 = vmatprep.subr.mxu0 0.0
    %467 = vmatpush1.msra.mxu0 0.0
    %468 = vmatprep.subr.mxu0 0.0
    %469 = vmatpush1.msra.mxu0 0.0
    %470 = vmatprep.subr.mxu0 0.0
    %471 = vmatpush1.msra.mxu0 0.0
    %472 = vmatprep.subr.mxu0 0.0
    %473 = vmatpush1.msra.mxu0 0.0
    %474 = vmatprep.subr.mxu0 0.0
    %475 = vmatpush1.msra.mxu0 0.0
    %476 = vmatprep.subr.mxu0 0.0
    %477 = vmatpush1.msra.mxu0 0.0
    %478 = vmatprep.subr.mxu0 0.0
    %479 = vmatpush1.msra.mxu0 0.0
    %480 = vmatprep.subr.mxu0 0.0
    %481 = vmatpush1.msra.mxu0 0.0
    %482 = vmatprep.subr.mxu0 0.0
    %483 = vmatpush1.msra.mxu0 0.0
    %484 = vmatprep.subr.mxu0 0.0
    %485 = vmatpush1.msra.mxu0 0.0
    %486 = vmatprep.subr.mxu0 0.0
    %487 = vmatpush1.msra.mxu0 0.0
    %488 = vmatprep.subr.mxu0 0.0
    %489 = vmatpush1.msra.mxu0 0.0
    %490 = vmatprep.subr.mxu0 0.0
    %491 = vmatpush1.msra.mxu0 0.0
    %492 = vmatprep.subr.mxu0 0.0
    %493 = vmatpush1.msra.mxu0 0.0
    %494 = vmatprep.subr.mxu0 0.0
    %495 = vmatpush1.msra.mxu0 0.0
    %496 = vmatprep.subr.mxu0 0.0
    %497 = vmatpush1.msra.mxu0 0.0
    %498 = vmatprep.subr.mxu0 0.0
    %499 = vmatpush1.msra.mxu0 0.0
    %500 = vmatprep.subr.mxu0 0.0
    %501 = vmatpush1.msra.mxu0 0.0
    %502 = vmatprep.mubr.f32.mxu0 0.0
    %503 = vmatmul.mubr.f32.gmra.mrb[0].mxu0 %v436
    %v504 = vpop.f32.mrb[0].mxu0
    %v505 = vadd.f32 0.0, %v504
    %v506 = vpop.f32.mrb[0].mxu0
    %507 = vdwg.mxu0
    %v508 = vadd.f32 %v429, %v505
    %v509 = vxor.u32 %v508, 2147483648
    %v510 = vmul.f32 %v509, 1.442695
    %v511 = vpow.pop %v510
    %v512 = vadd.f32 %v511, 1.0
    %v513 = vrcp.pop %v512
    %v514 = vmul.f32 1.0, %v513
    %v515 = vtanh.pop %v508
    %v516 = vld [vmem:[#allocation3] sm:$0xff]
    %518 = vrot.lane.b32.xlu0 %v516, 32
    %v519 = vpop.permute.xlu0 %518
    %v521 = vmul.f32 %v514, %v519
    %523 = vrot.lane.b32.xlu0 %v515, 64
    %v524 = vpop.permute.xlu0 %523
    %v526 = vmul.f32 %v514, %v524
    %528 = vrot.lane.b32.xlu0 %v526, 32
    %v529 = vpop.permute.xlu0 %528
    %v531 = vadd.f32 %v521, %v529
    %v532 = vtanh.pop %v531
    %534 = vrot.lane.b32.xlu0 %v532, 64
    %v535 = vpop.permute.xlu0 %534
    %v537 = vmul.f32 %v514, %v535
    %539 = vrot.lane.b32.xlu0 %v531, 96
    %v540 = vpop.permute.xlu0 %539
    %542 = vst.msk [vmem:[#allocation3] sm:$0xff] %vm191, %v540
    %544 = vrot.lane.b32.xlu0 %v537, 32
    %v545 = vpop.permute.xlu0 %544
    %547 = vst.msk [vmem:[#allocation2] sm:$0xff] %vm191, %v545
    %s548 = scalar_lea.vmem %s4, 16
    %549 = vst.msk [vmem:[%s548] sm:$0xff] %vm191, %v545
    %s550 = scalar_lea.vmem [#allocation4], 24
    %v551 = vld [vmem:[%s550] sm:$0xff]
    %v552 = vld [vmem:[#allocation2] sm:$0xff]
    %v553 = vld [vmem:[%s2] sm:$0xff]
    %v554 = vld [vmem:[%s2 + $0x8] sm:$0xff]
    %v555 = vld [vmem:[%s2 + $0x10] sm:$0xff]
    %v556 = vld [vmem:[%s2 + $0x18] sm:$0xff]
    %v558 = vsel %vm191, %v552, 0
    %560 = vmatprep.subr.mxu0 0.0
    %561 = vmatpush1.msra.mxu0 %v553
    %562 = vmatprep.subr.mxu0 0.0
    %563 = vmatpush1.msra.mxu0 %v554
    %564 = vmatprep.subr.mxu0 0.0
    %565 = vmatpush1.msra.mxu0 %v555
    %566 = vmatprep.subr.mxu0 0.0
    %567 = vmatpush1.msra.mxu0 %v556
    %568 = vmatprep.subr.mxu0 0.0
    %569 = vmatpush1.msra.mxu0 0.0
    %570 = vmatprep.subr.mxu0 0.0
    %571 = vmatpush1.msra.mxu0 0.0
    %572 = vmatprep.subr.mxu0 0.0
    %573 = vmatpush1.msra.mxu0 0.0
    %574 = vmatprep.subr.mxu0 0.0
    %575 = vmatpush1.msra.mxu0 0.0
    %576 = vmatprep.subr.mxu0 0.0
    %577 = vmatpush1.msra.mxu0 0.0
    %578 = vmatprep.subr.mxu0 0.0
    %579 = vmatpush1.msra.mxu0 0.0
    %580 = vmatprep.subr.mxu0 0.0
    %581 = vmatpush1.msra.mxu0 0.0
    %582 = vmatprep.subr.mxu0 0.0
    %583 = vmatpush1.msra.mxu0 0.0
    %584 = vmatprep.subr.mxu0 0.0
    %585 = vmatpush1.msra.mxu0 0.0
    %586 = vmatprep.subr.mxu0 0.0
    %587 = vmatpush1.msra.mxu0 0.0
    %588 = vmatprep.subr.mxu0 0.0
    %589 = vmatpush1.msra.mxu0 0.0
    %590 = vmatprep.subr.mxu0 0.0
    %591 = vmatpush1.msra.mxu0 0.0
    %592 = vmatprep.subr.mxu0 0.0
    %593 = vmatpush1.msra.mxu0 0.0
    %594 = vmatprep.subr.mxu0 0.0
    %595 = vmatpush1.msra.mxu0 0.0
    %596 = vmatprep.subr.mxu0 0.0
    %597 = vmatpush1.msra.mxu0 0.0
    %598 = vmatprep.subr.mxu0 0.0
    %599 = vmatpush1.msra.mxu0 0.0
    %600 = vmatprep.subr.mxu0 0.0
    %601 = vmatpush1.msra.mxu0 0.0
    %602 = vmatprep.subr.mxu0 0.0
    %603 = vmatpush1.msra.mxu0 0.0
    %604 = vmatprep.subr.mxu0 0.0
    %605 = vmatpush1.msra.mxu0 0.0
    %606 = vmatprep.subr.mxu0 0.0
    %607 = vmatpush1.msra.mxu0 0.0
    %608 = vmatprep.subr.mxu0 0.0
    %609 = vmatpush1.msra.mxu0 0.0
    %610 = vmatprep.subr.mxu0 0.0
    %611 = vmatpush1.msra.mxu0 0.0
    %612 = vmatprep.subr.mxu0 0.0
    %613 = vmatpush1.msra.mxu0 0.0
    %614 = vmatprep.subr.mxu0 0.0
    %615 = vmatpush1.msra.mxu0 0.0
    %616 = vmatprep.subr.mxu0 0.0
    %617 = vmatpush1.msra.mxu0 0.0
    %618 = vmatprep.subr.mxu0 0.0
    %619 = vmatpush1.msra.mxu0 0.0
    %620 = vmatprep.subr.mxu0 0.0
    %621 = vmatpush1.msra.mxu0 0.0
    %622 = vmatprep.subr.mxu0 0.0
    %623 = vmatpush1.msra.mxu0 0.0
    %624 = vmatprep.mubr.f32.mxu0 0.0
    %625 = vmatmul.mubr.f32.gmra.mrb[0].mxu0 %v558
    %v626 = vpop.f32.mrb[0].mxu0
    %v627 = vadd.f32 0.0, %v626
    %v628 = vpop.f32.mrb[0].mxu0
    %629 = vdwg.mxu0
    %v630 = vadd.f32 %v551, %v627
    %v631 = vxor.u32 %v630, 2147483648
    %v632 = vmul.f32 %v631, 1.442695
    %v633 = vpow.pop %v632
    %v634 = vadd.f32 %v633, 1.0
    %v635 = vrcp.pop %v634
    %v636 = vmul.f32 1.0, %v635
    %v637 = vtanh.pop %v630
    %v638 = vld [vmem:[#allocation3] sm:$0xff]
    %640 = vrot.lane.b32.xlu0 %v638, 32
    %v641 = vpop.permute.xlu0 %640
    %v643 = vmul.f32 %v636, %v641
    %645 = vrot.lane.b32.xlu0 %v637, 64
    %v646 = vpop.permute.xlu0 %645
    %v648 = vmul.f32 %v636, %v646
    %650 = vrot.lane.b32.xlu0 %v648, 32
    %v651 = vpop.permute.xlu0 %650
    %v653 = vadd.f32 %v643, %v651
    %v654 = vtanh.pop %v653
    %656 = vrot.lane.b32.xlu0 %v654, 64
    %v657 = vpop.permute.xlu0 %656
    %v659 = vmul.f32 %v636, %v657
    %661 = vrot.lane.b32.xlu0 %v653, 96
    %v662 = vpop.permute.xlu0 %661
    %664 = vst.msk [vmem:[#allocation3] sm:$0xff] %vm191, %v662
    %666 = vrot.lane.b32.xlu0 %v659, 32
    %v667 = vpop.permute.xlu0 %666
    %669 = vst.msk [vmem:[#allocation2] sm:$0xff] %vm191, %v667
    %s670 = scalar_lea.vmem %s4, 24
    %671 = vst.msk [vmem:[%s670] sm:$0xff] %vm191, %v667
    %s672 = scalar_lea.vmem [#allocation4], 32
    %v673 = vld [vmem:[%s672] sm:$0xff]
    %v674 = vld [vmem:[#allocation2] sm:$0xff]
    %v675 = vld [vmem:[%s2] sm:$0xff]
    %v676 = vld [vmem:[%s2 + $0x8] sm:$0xff]
    %v677 = vld [vmem:[%s2 + $0x10] sm:$0xff]
    %v678 = vld [vmem:[%s2 + $0x18] sm:$0xff]
    %v680 = vsel %vm191, %v674, 0
    %682 = vmatprep.subr.mxu0 0.0
    %683 = vmatpush1.msra.mxu0 %v675
    %684 = vmatprep.subr.mxu0 0.0
    %685 = vmatpush1.msra.mxu0 %v676
    %686 = vmatprep.subr.mxu0 0.0
    %687 = vmatpush1.msra.mxu0 %v677
    %688 = vmatprep.subr.mxu0 0.0
    %689 = vmatpush1.msra.mxu0 %v678
    %690 = vmatprep.subr.mxu0 0.0
    %691 = vmatpush1.msra.mxu0 0.0
    %692 = vmatprep.subr.mxu0 0.0
    %693 = vmatpush1.msra.mxu0 0.0
    %694 = vmatprep.subr.mxu0 0.0
    %695 = vmatpush1.msra.mxu0 0.0
    %696 = vmatprep.subr.mxu0 0.0
    %697 = vmatpush1.msra.mxu0 0.0
    %698 = vmatprep.subr.mxu0 0.0
    %699 = vmatpush1.msra.mxu0 0.0
    %700 = vmatprep.subr.mxu0 0.0
    %701 = vmatpush1.msra.mxu0 0.0
    %702 = vmatprep.subr.mxu0 0.0
    %703 = vmatpush1.msra.mxu0 0.0
    %704 = vmatprep.subr.mxu0 0.0
    %705 = vmatpush1.msra.mxu0 0.0
    %706 = vmatprep.subr.mxu0 0.0
    %707 = vmatpush1.msra.mxu0 0.0
    %708 = vmatprep.subr.mxu0 0.0
    %709 = vmatpush1.msra.mxu0 0.0
    %710 = vmatprep.subr.mxu0 0.0
    %711 = vmatpush1.msra.mxu0 0.0
    %712 = vmatprep.subr.mxu0 0.0
    %713 = vmatpush1.msra.mxu0 0.0
    %714 = vmatprep.subr.mxu0 0.0
    %715 = vmatpush1.msra.mxu0 0.0
    %716 = vmatprep.subr.mxu0 0.0
    %717 = vmatpush1.msra.mxu0 0.0
    %718 = vmatprep.subr.mxu0 0.0
    %719 = vmatpush1.msra.mxu0 0.0
    %720 = vmatprep.subr.mxu0 0.0
    %721 = vmatpush1.msra.mxu0 0.0
    %722 = vmatprep.subr.mxu0 0.0
    %723 = vmatpush1.msra.mxu0 0.0
    %724 = vmatprep.subr.mxu0 0.0
    %725 = vmatpush1.msra.mxu0 0.0
    %726 = vmatprep.subr.mxu0 0.0
    %727 = vmatpush1.msra.mxu0 0.0
    %728 = vmatprep.subr.mxu0 0.0
    %729 = vmatpush1.msra.mxu0 0.0
    %730 = vmatprep.subr.mxu0 0.0
    %731 = vmatpush1.msra.mxu0 0.0
    %732 = vmatprep.subr.mxu0 0.0
    %733 = vmatpush1.msra.mxu0 0.0
    %734 = vmatprep.subr.mxu0 0.0
    %735 = vmatpush1.msra.mxu0 0.0
    %736 = vmatprep.subr.mxu0 0.0
    %737 = vmatpush1.msra.mxu0 0.0
    %738 = vmatprep.subr.mxu0 0.0
    %739 = vmatpush1.msra.mxu0 0.0
    %740 = vmatprep.subr.mxu0 0.0
    %741 = vmatpush1.msra.mxu0 0.0
    %742 = vmatprep.subr.mxu0 0.0
    %743 = vmatpush1.msra.mxu0 0.0
    %744 = vmatprep.subr.mxu0 0.0
    %745 = vmatpush1.msra.mxu0 0.0
    %746 = vmatprep.mubr.f32.mxu0 0.0
    %747 = vmatmul.mubr.f32.gmra.mrb[0].mxu0 %v680
    %v748 = vpop.f32.mrb[0].mxu0
    %v749 = vadd.f32 0.0, %v748
    %v750 = vpop.f32.mrb[0].mxu0
    %751 = vdwg.mxu0
    %v752 = vadd.f32 %v673, %v749
    %v753 = vxor.u32 %v752, 2147483648
    %v754 = vmul.f32 %v753, 1.442695
    %v755 = vpow.pop %v754
    %v756 = vadd.f32 %v755, 1.0
    %v757 = vrcp.pop %v756
    %v758 = vmul.f32 1.0, %v757
    %v759 = vtanh.pop %v752
    %v760 = vld [vmem:[#allocation3] sm:$0xff]
    %762 = vrot.lane.b32.xlu0 %v760, 32
    %v763 = vpop.permute.xlu0 %762
    %v765 = vmul.f32 %v758, %v763
    %767 = vrot.lane.b32.xlu0 %v759, 64
    %v768 = vpop.permute.xlu0 %767
    %v770 = vmul.f32 %v758, %v768
    %772 = vrot.lane.b32.xlu0 %v770, 32
    %v773 = vpop.permute.xlu0 %772
    %v775 = vadd.f32 %v765, %v773
    %v776 = vtanh.pop %v775
    %778 = vrot.lane.b32.xlu0 %v776, 64
    %v779 = vpop.permute.xlu0 %778
    %v781 = vmul.f32 %v758, %v779
    %783 = vrot.lane.b32.xlu0 %v775, 96
    %v784 = vpop.permute.xlu0 %783
    %786 = vst.msk [vmem:[#allocation3] sm:$0xff] %vm191, %v784
    %788 = vrot.lane.b32.xlu0 %v781, 32
    %v789 = vpop.permute.xlu0 %788
    %791 = vst.msk [vmem:[#allocation2] sm:$0xff] %vm191, %v789
    %s792 = scalar_lea.vmem %s4, 32
    %793 = vst.msk [vmem:[%s792] sm:$0xff] %vm191, %v789
    %s794 = scalar_lea.vmem [#allocation4], 40
    %v795 = vld [vmem:[%s794] sm:$0xff]
    %v796 = vld [vmem:[#allocation2] sm:$0xff]
    %v797 = vld [vmem:[%s2] sm:$0xff]
    %v798 = vld [vmem:[%s2 + $0x8] sm:$0xff]
    %v799 = vld [vmem:[%s2 + $0x10] sm:$0xff]
    %v800 = vld [vmem:[%s2 + $0x18] sm:$0xff]
    %v802 = vsel %vm191, %v796, 0
    %804 = vmatprep.subr.mxu0 0.0
    %805 = vmatpush1.msra.mxu0 %v797
    %806 = vmatprep.subr.mxu0 0.0
    %807 = vmatpush1.msra.mxu0 %v798
    %808 = vmatprep.subr.mxu0 0.0
    %809 = vmatpush1.msra.mxu0 %v799
    %810 = vmatprep.subr.mxu0 0.0
    %811 = vmatpush1.msra.mxu0 %v800
    %812 = vmatprep.subr.mxu0 0.0
    %813 = vmatpush1.msra.mxu0 0.0
    %814 = vmatprep.subr.mxu0 0.0
    %815 = vmatpush1.msra.mxu0 0.0
    %816 = vmatprep.subr.mxu0 0.0
    %817 = vmatpush1.msra.mxu0 0.0
    %818 = vmatprep.subr.mxu0 0.0
    %819 = vmatpush1.msra.mxu0 0.0
    %820 = vmatprep.subr.mxu0 0.0
    %821 = vmatpush1.msra.mxu0 0.0
    %822 = vmatprep.subr.mxu0 0.0
    %823 = vmatpush1.msra.mxu0 0.0
    %824 = vmatprep.subr.mxu0 0.0
    %825 = vmatpush1.msra.mxu0 0.0
    %826 = vmatprep.subr.mxu0 0.0
    %827 = vmatpush1.msra.mxu0 0.0
    %828 = vmatprep.subr.mxu0 0.0
    %829 = vmatpush1.msra.mxu0 0.0
    %830 = vmatprep.subr.mxu0 0.0
    %831 = vmatpush1.msra.mxu0 0.0
    %832 = vmatprep.subr.mxu0 0.0
    %833 = vmatpush1.msra.mxu0 0.0
    %834 = vmatprep.subr.mxu0 0.0
    %835 = vmatpush1.msra.mxu0 0.0
    %836 = vmatprep.subr.mxu0 0.0
    %837 = vmatpush1.msra.mxu0 0.0
    %838 = vmatprep.subr.mxu0 0.0
    %839 = vmatpush1.msra.mxu0 0.0
    %840 = vmatprep.subr.mxu0 0.0
    %841 = vmatpush1.msra.mxu0 0.0
    %842 = vmatprep.subr.mxu0 0.0
    %843 = vmatpush1.msra.mxu0 0.0
    %844 = vmatprep.subr.mxu0 0.0
    %845 = vmatpush1.msra.mxu0 0.0
    %846 = vmatprep.subr.mxu0 0.0
    %847 = vmatpush1.msra.mxu0 0.0
    %848 = vmatprep.subr.mxu0 0.0
    %849 = vmatpush1.msra.mxu0 0.0
    %850 = vmatprep.subr.mxu0 0.0
    %851 = vmatpush1.msra.mxu0 0.0
    %852 = vmatprep.subr.mxu0 0.0
    %853 = vmatpush1.msra.mxu0 0.0
    %854 = vmatprep.subr.mxu0 0.0
    %855 = vmatpush1.msra.mxu0 0.0
    %856 = vmatprep.subr.mxu0 0.0
    %857 = vmatpush1.msra.mxu0 0.0
    %858 = vmatprep.subr.mxu0 0.0
    %859 = vmatpush1.msra.mxu0 0.0
    %860 = vmatprep.subr.mxu0 0.0
    %861 = vmatpush1.msra.mxu0 0.0
    %862 = vmatprep.subr.mxu0 0.0
    %863 = vmatpush1.msra.mxu0 0.0
    %864 = vmatprep.subr.mxu0 0.0
    %865 = vmatpush1.msra.mxu0 0.0
    %866 = vmatprep.subr.mxu0 0.0
    %867 = vmatpush1.msra.mxu0 0.0
    %868 = vmatprep.mubr.f32.mxu0 0.0
    %869 = vmatmul.mubr.f32.gmra.mrb[0].mxu0 %v802
    %v870 = vpop.f32.mrb[0].mxu0
    %v871 = vadd.f32 0.0, %v870
    %v872 = vpop.f32.mrb[0].mxu0
    %873 = vdwg.mxu0
    %v874 = vadd.f32 %v795, %v871
    %v875 = vxor.u32 %v874, 2147483648
    %v876 = vmul.f32 %v875, 1.442695
    %v877 = vpow.pop %v876
    %v878 = vadd.f32 %v877, 1.0
    %v879 = vrcp.pop %v878
    %v880 = vmul.f32 1.0, %v879
    %v881 = vtanh.pop %v874
    %v882 = vld [vmem:[#allocation3] sm:$0xff]
    %884 = vrot.lane.b32.xlu0 %v882, 32
    %v885 = vpop.permute.xlu0 %884
    %v887 = vmul.f32 %v880, %v885
    %889 = vrot.lane.b32.xlu0 %v881, 64
    %v890 = vpop.permute.xlu0 %889
    %v892 = vmul.f32 %v880, %v890
    %894 = vrot.lane.b32.xlu0 %v892, 32
    %v895 = vpop.permute.xlu0 %894
    %v897 = vadd.f32 %v887, %v895
    %v898 = vtanh.pop %v897
    %900 = vrot.lane.b32.xlu0 %v898, 64
    %v901 = vpop.permute.xlu0 %900
    %v903 = vmul.f32 %v880, %v901
    %905 = vrot.lane.b32.xlu0 %v897, 96
    %v906 = vpop.permute.xlu0 %905
    %908 = vst.msk [vmem:[#allocation3] sm:$0xff] %vm191, %v906
    %910 = vrot.lane.b32.xlu0 %v903, 32
    %v911 = vpop.permute.xlu0 %910
    %913 = vst.msk [vmem:[#allocation2] sm:$0xff] %vm191, %v911
    %s914 = scalar_lea.vmem %s4, 40
    %915 = vst.msk [vmem:[%s914] sm:$0xff] %vm191, %v911
    %s916 = scalar_lea.vmem [#allocation4], 48
    %v917 = vld [vmem:[%s916] sm:$0xff]
    %v918 = vld [vmem:[#allocation2] sm:$0xff]
    %v919 = vld [vmem:[%s2] sm:$0xff]
    %v920 = vld [vmem:[%s2 + $0x8] sm:$0xff]
    %v921 = vld [vmem:[%s2 + $0x10] sm:$0xff]
    %v922 = vld [vmem:[%s2 + $0x18] sm:$0xff]
    %v924 = vsel %vm191, %v918, 0
    %926 = vmatprep.subr.mxu0 0.0
    %927 = vmatpush1.msra.mxu0 %v919
    %928 = vmatprep.subr.mxu0 0.0
    %929 = vmatpush1.msra.mxu0 %v920
    %930 = vmatprep.subr.mxu0 0.0
    %931 = vmatpush1.msra.mxu0 %v921
    %932 = vmatprep.subr.mxu0 0.0
    %933 = vmatpush1.msra.mxu0 %v922
    %934 = vmatprep.subr.mxu0 0.0
    %935 = vmatpush1.msra.mxu0 0.0
    %936 = vmatprep.subr.mxu0 0.0
    %937 = vmatpush1.msra.mxu0 0.0
    %938 = vmatprep.subr.mxu0 0.0
    %939 = vmatpush1.msra.mxu0 0.0
    %940 = vmatprep.subr.mxu0 0.0
    %941 = vmatpush1.msra.mxu0 0.0
    %942 = vmatprep.subr.mxu0 0.0
    %943 = vmatpush1.msra.mxu0 0.0
    %944 = vmatprep.subr.mxu0 0.0
    %945 = vmatpush1.msra.mxu0 0.0
    %946 = vmatprep.subr.mxu0 0.0
    %947 = vmatpush1.msra.mxu0 0.0
    %948 = vmatprep.subr.mxu0 0.0
    %949 = vmatpush1.msra.mxu0 0.0
    %950 = vmatprep.subr.mxu0 0.0
    %951 = vmatpush1.msra.mxu0 0.0
    %952 = vmatprep.subr.mxu0 0.0
    %953 = vmatpush1.msra.mxu0 0.0
    %954 = vmatprep.subr.mxu0 0.0
    %955 = vmatpush1.msra.mxu0 0.0
    %956 = vmatprep.subr.mxu0 0.0
    %957 = vmatpush1.msra.mxu0 0.0
    %958 = vmatprep.subr.mxu0 0.0
    %959 = vmatpush1.msra.mxu0 0.0
    %960 = vmatprep.subr.mxu0 0.0
    %961 = vmatpush1.msra.mxu0 0.0
    %962 = vmatprep.subr.mxu0 0.0
    %963 = vmatpush1.msra.mxu0 0.0
    %964 = vmatprep.subr.mxu0 0.0
    %965 = vmatpush1.msra.mxu0 0.0
    %966 = vmatprep.subr.mxu0 0.0
    %967 = vmatpush1.msra.mxu0 0.0
    %968 = vmatprep.subr.mxu0 0.0
    %969 = vmatpush1.msra.mxu0 0.0
    %970 = vmatprep.subr.mxu0 0.0
    %971 = vmatpush1.msra.mxu0 0.0
    %972 = vmatprep.subr.mxu0 0.0
    %973 = vmatpush1.msra.mxu0 0.0
    %974 = vmatprep.subr.mxu0 0.0
    %975 = vmatpush1.msra.mxu0 0.0
    %976 = vmatprep.subr.mxu0 0.0
    %977 = vmatpush1.msra.mxu0 0.0
    %978 = vmatprep.subr.mxu0 0.0
    %979 = vmatpush1.msra.mxu0 0.0
    %980 = vmatprep.subr.mxu0 0.0
    %981 = vmatpush1.msra.mxu0 0.0
    %982 = vmatprep.subr.mxu0 0.0
    %983 = vmatpush1.msra.mxu0 0.0
    %984 = vmatprep.subr.mxu0 0.0
    %985 = vmatpush1.msra.mxu0 0.0
    %986 = vmatprep.subr.mxu0 0.0
    %987 = vmatpush1.msra.mxu0 0.0
    %988 = vmatprep.subr.mxu0 0.0
    %989 = vmatpush1.msra.mxu0 0.0
    %990 = vmatprep.mubr.f32.mxu0 0.0
    %991 = vmatmul.mubr.f32.gmra.mrb[0].mxu0 %v924
    %v992 = vpop.f32.mrb[0].mxu0
    %v993 = vadd.f32 0.0, %v992
    %v994 = vpop.f32.mrb[0].mxu0
    %995 = vdwg.mxu0
    %v996 = vadd.f32 %v917, %v993
    %v997 = vxor.u32 %v996, 2147483648
    %v998 = vmul.f32 %v997, 1.442695
    %v999 = vpow.pop %v998
    %v1000 = vadd.f32 %v999, 1.0
    %v1001 = vrcp.pop %v1000
    %v1002 = vmul.f32 1.0, %v1001
    %v1003 = vtanh.pop %v996
    %v1004 = vld [vmem:[#allocation3] sm:$0xff]
    %1006 = vrot.lane.b32.xlu0 %v1004, 32
    %v1007 = vpop.permute.xlu0 %1006
    %v1009 = vmul.f32 %v1002, %v1007
    %1011 = vrot.lane.b32.xlu0 %v1003, 64
    %v1012 = vpop.permute.xlu0 %1011
    %v1014 = vmul.f32 %v1002, %v1012
    %1016 = vrot.lane.b32.xlu0 %v1014, 32
    %v1017 = vpop.permute.xlu0 %1016
    %v1019 = vadd.f32 %v1009, %v1017
    %v1020 = vtanh.pop %v1019
    %1022 = vrot.lane.b32.xlu0 %v1020, 64
    %v1023 = vpop.permute.xlu0 %1022
    %v1025 = vmul.f32 %v1002, %v1023
    %1027 = vrot.lane.b32.xlu0 %v1019, 96
    %v1028 = vpop.permute.xlu0 %1027
    %1030 = vst.msk [vmem:[#allocation3] sm:$0xff] %vm191, %v1028
    %1032 = vrot.lane.b32.xlu0 %v1025, 32
    %v1033 = vpop.permute.xlu0 %1032
    %1035 = vst.msk [vmem:[#allocation2] sm:$0xff] %vm191, %v1033
    %s1036 = scalar_lea.vmem %s4, 48
    %1037 = vst.msk [vmem:[%s1036] sm:$0xff] %vm191, %v1033
    %s1038 = scalar_lea.vmem [#allocation4], 56
    %v1039 = vld [vmem:[%s1038] sm:$0xff]
    %v1040 = vld [vmem:[#allocation2] sm:$0xff]
    %v1041 = vld [vmem:[%s2] sm:$0xff]
    %v1042 = vld [vmem:[%s2 + $0x8] sm:$0xff]
    %v1043 = vld [vmem:[%s2 + $0x10] sm:$0xff]
    %v1044 = vld [vmem:[%s2 + $0x18] sm:$0xff]
    %v1046 = vsel %vm191, %v1040, 0
    %1048 = vmatprep.subr.mxu0 0.0
    %1049 = vmatpush1.msra.mxu0 %v1041
    %1050 = vmatprep.subr.mxu0 0.0
    %1051 = vmatpush1.msra.mxu0 %v1042
    %1052 = vmatprep.subr.mxu0 0.0
    %1053 = vmatpush1.msra.mxu0 %v1043
    %1054 = vmatprep.subr.mxu0 0.0
    %1055 = vmatpush1.msra.mxu0 %v1044
    %1056 = vmatprep.subr.mxu0 0.0
    %1057 = vmatpush1.msra.mxu0 0.0
    %1058 = vmatprep.subr.mxu0 0.0
    %1059 = vmatpush1.msra.mxu0 0.0
    %1060 = vmatprep.subr.mxu0 0.0
    %1061 = vmatpush1.msra.mxu0 0.0
    %1062 = vmatprep.subr.mxu0 0.0
    %1063 = vmatpush1.msra.mxu0 0.0
    %1064 = vmatprep.subr.mxu0 0.0
    %1065 = vmatpush1.msra.mxu0 0.0
    %1066 = vmatprep.subr.mxu0 0.0
    %1067 = vmatpush1.msra.mxu0 0.0
    %1068 = vmatprep.subr.mxu0 0.0
    %1069 = vmatpush1.msra.mxu0 0.0
    %1070 = vmatprep.subr.mxu0 0.0
    %1071 = vmatpush1.msra.mxu0 0.0
    %1072 = vmatprep.subr.mxu0 0.0
    %1073 = vmatpush1.msra.mxu0 0.0
    %1074 = vmatprep.subr.mxu0 0.0
    %1075 = vmatpush1.msra.mxu0 0.0
    %1076 = vmatprep.subr.mxu0 0.0
    %1077 = vmatpush1.msra.mxu0 0.0
    %1078 = vmatprep.subr.mxu0 0.0
    %1079 = vmatpush1.msra.mxu0 0.0
    %1080 = vmatprep.subr.mxu0 0.0
    %1081 = vmatpush1.msra.mxu0 0.0
    %1082 = vmatprep.subr.mxu0 0.0
    %1083 = vmatpush1.msra.mxu0 0.0
    %1084 = vmatprep.subr.mxu0 0.0
    %1085 = vmatpush1.msra.mxu0 0.0
    %1086 = vmatprep.subr.mxu0 0.0
    %1087 = vmatpush1.msra.mxu0 0.0
    %1088 = vmatprep.subr.mxu0 0.0
    %1089 = vmatpush1.msra.mxu0 0.0
    %1090 = vmatprep.subr.mxu0 0.0
    %1091 = vmatpush1.msra.mxu0 0.0
    %1092 = vmatprep.subr.mxu0 0.0
    %1093 = vmatpush1.msra.mxu0 0.0
    %1094 = vmatprep.subr.mxu0 0.0
    %1095 = vmatpush1.msra.mxu0 0.0
    %1096 = vmatprep.subr.mxu0 0.0
    %1097 = vmatpush1.msra.mxu0 0.0
    %1098 = vmatprep.subr.mxu0 0.0
    %1099 = vmatpush1.msra.mxu0 0.0
    %1100 = vmatprep.subr.mxu0 0.0
    %1101 = vmatpush1.msra.mxu0 0.0
    %1102 = vmatprep.subr.mxu0 0.0
    %1103 = vmatpush1.msra.mxu0 0.0
    %1104 = vmatprep.subr.mxu0 0.0
    %1105 = vmatpush1.msra.mxu0 0.0
    %1106 = vmatprep.subr.mxu0 0.0
    %1107 = vmatpush1.msra.mxu0 0.0
    %1108 = vmatprep.subr.mxu0 0.0
    %1109 = vmatpush1.msra.mxu0 0.0
    %1110 = vmatprep.subr.mxu0 0.0
    %1111 = vmatpush1.msra.mxu0 0.0
    %1112 = vmatprep.mubr.f32.mxu0 0.0
    %1113 = vmatmul.mubr.f32.gmra.mrb[0].mxu0 %v1046
    %v1114 = vpop.f32.mrb[0].mxu0
    %v1115 = vadd.f32 0.0, %v1114
    %v1116 = vpop.f32.mrb[0].mxu0
    %1117 = vdwg.mxu0
    %v1118 = vadd.f32 %v1039, %v1115
    %v1119 = vxor.u32 %v1118, 2147483648
    %v1120 = vmul.f32 %v1119, 1.442695
    %v1121 = vpow.pop %v1120
    %v1122 = vadd.f32 %v1121, 1.0
    %v1123 = vrcp.pop %v1122
    %v1124 = vmul.f32 1.0, %v1123
    %v1125 = vtanh.pop %v1118
    %v1126 = vld [vmem:[#allocation3] sm:$0xff]
    %1128 = vrot.lane.b32.xlu0 %v1126, 32
    %v1129 = vpop.permute.xlu0 %1128
    %v1131 = vmul.f32 %v1124, %v1129
    %1133 = vrot.lane.b32.xlu0 %v1125, 64
    %v1134 = vpop.permute.xlu0 %1133
    %v1136 = vmul.f32 %v1124, %v1134
    %1138 = vrot.lane.b32.xlu0 %v1136, 32
    %v1139 = vpop.permute.xlu0 %1138
    %v1141 = vadd.f32 %v1131, %v1139
    %v1142 = vtanh.pop %v1141
    %1144 = vrot.lane.b32.xlu0 %v1142, 64
    %v1145 = vpop.permute.xlu0 %1144
    %v1147 = vmul.f32 %v1124, %v1145
    %1149 = vrot.lane.b32.xlu0 %v1141, 96
    %v1150 = vpop.permute.xlu0 %1149
    %1152 = vst.msk [vmem:[#allocation3] sm:$0xff] %vm191, %v1150
    %1154 = vrot.lane.b32.xlu0 %v1147, 32
    %v1155 = vpop.permute.xlu0 %1154
    %1157 = vst.msk [vmem:[#allocation2] sm:$0xff] %vm191, %v1155
    %s1158 = scalar_lea.vmem %s4, 56
    %1159 = vst.msk [vmem:[%s1158] sm:$0xff] %vm191, %v1155
    // Predicated region
    $region22: #{tpu_custom_call.1} parent=1 // pred_check
      %p1160 = pneg %p22
    $region23: #{tpu_custom_call.1} parent=1 // pred_check_branch
      %1162 = sbr.rel (%p1160) target = $region25
    $region24: #{tpu_custom_call.1} parent=1 // pred_region
      %v1163 = vld [vmem:[#allocation2] sm:$0xff]
      %1164 = vst.msk [vmem:[#allocation5] sm:$0xff] %vm191, %v1163
      %v1165 = vld [vmem:[#allocation3] sm:$0xff]
      %1166 = vst.msk [vmem:[#allocation7] sm:$0xff] %vm191, %v1165
    $region25: #{tpu_custom_call.1} parent=1 // pred_fallthru
      _
    // Predicated region
    $region26: #{tpu_custom_call.1} parent=1 // pred_check
      _
    $region27: #{tpu_custom_call.1} parent=1 // pred_check_branch
      %1168 = sbr.rel (0) target = $region29
    $region28: #{tpu_custom_call.1} parent=1 // pred_region
      _
    $region29: #{tpu_custom_call.1} parent=1 // pred_fallthru
      _
    // Predicated region
    $region30: #{tpu_custom_call.1} parent=1 // pred_check
      _
    $region31: #{tpu_custom_call.1} parent=1 // pred_check_branch
      %1170 = sbr.rel (0) target = $region33
    $region32: #{tpu_custom_call.1} parent=1 // pred_region
      %s1172 = ssub.s32 128, 128
      %1173 = vsyncadd [#allocation6], %s1172
      %s1175 = sshll.u32 [#allocation5], 4
      %s1176 = int_to_ptr.vmem [resolvable:$true] %s1175
      %1178 = dma.vmem_to_hbm [thread:$0]  %s1176, 128, %s5, [#allocation6]
    $region33: #{tpu_custom_call.1} parent=1 // pred_fallthru
      _
    // Predicated region
    $region34: #{tpu_custom_call.1} parent=1 // pred_check
      _
    $region35: #{tpu_custom_call.1} parent=1 // pred_check_branch
      %1180 = sbr.rel (0) target = $region37
    $region36: #{tpu_custom_call.1} parent=1 // pred_region
      %s1182 = ssub.s32 128, 128
      %1183 = vsyncadd [#allocation8], %s1182
      %s1185 = sshll.u32 [#allocation7], 4
      %s1186 = int_to_ptr.vmem [resolvable:$true] %s1185
      %1188 = dma.vmem_to_hbm [thread:$0]  %s1186, 128, %s6, [#allocation8]
    $region37: #{tpu_custom_call.1} parent=1 // pred_fallthru
      _
    // Predicated region
    $region38: #{tpu_custom_call.1} parent=1 // pred_check
      _
    $region39: #{tpu_custom_call.1} parent=1 // pred_check_branch
      %1190 = sbr.rel (0) target = $region41
    $region40: #{tpu_custom_call.1} parent=1 // pred_region
      _
    $region41: #{tpu_custom_call.1} parent=1 // pred_fallthru
      _
    // Predicated region
    $region42: #{tpu_custom_call.1} parent=1 // pred_check
      _
    $region43: #{tpu_custom_call.1} parent=1 // pred_check_branch
      %1192 = sbr.rel (0) target = $region45
    $region44: #{tpu_custom_call.1} parent=1 // pred_region
      %1193 = dma.done [#allocation6], 128
    $region45: #{tpu_custom_call.1} parent=1 // pred_fallthru
      _
    // Predicated region
    $region46: #{tpu_custom_call.1} parent=1 // pred_check
      _
    $region47: #{tpu_custom_call.1} parent=1 // pred_check_branch
      %1195 = sbr.rel (0) target = $region49
    $region48: #{tpu_custom_call.1} parent=1 // pred_region
      %1196 = dma.done [#allocation8], 128
    $region49: #{tpu_custom_call.1} parent=1 // pred_fallthru
      _
    %1197 = vsyncpa [#allocation6], 1
    %1198 = vsyncpa [#allocation8], 1

</llo_original>
